<compile_context>
chip_gen: v5e
topology: v5e:2x2
jax: 0.10.0
libtpu: 0.0.40
codegen_flags: <defaults>
</compile_context>

<pallas_src>
import jax
import jax.numpy as jnp
from jax import lax
from jax.experimental import pallas as pl
from jax.experimental.pallas import tpu as pltpu


# ----------------------------- kernels ------------------------------------ #

def _fc_gate(avg, mx, w1_ref, w2_ref):
    """sigmoid(fc(avg) + fc(max)); avg/mx are (B, C) f32. Two small matmul
    pairs instead of a sublane concat/split (avoids per-step relayout)."""
    w1 = w1_ref[...].astype(jnp.float32)   # (C_r, C)
    w2 = w2_ref[...].astype(jnp.float32)   # (C, C_r)

    def fc(v):                              # (B, C) -> (B, C)
        h = lax.dot_general(v, w1, (((1,), (1,)), ((), ())),
                            preferred_element_type=jnp.float32)   # (B, C_r)
        h = jnp.maximum(h, 0.0)                                   # ReLU
        return lax.dot_general(h, w2, (((1,), (1,)), ((), ())),
                               preferred_element_type=jnp.float32)  # (B, C)

    return jax.nn.sigmoid(fc(avg) + fc(mx))                        # (B, C) f32


def _ca_kernel_nchw(x_ref, w1_ref, w2_ref, o_ref):
    # x_ref / o_ref: (B_blk, C, HW) -- HW on the lane axis.
    x = x_ref[...]                                                  # input dtype
    hw = x.shape[-1]
    avg = jnp.sum(x, axis=-1, dtype=jnp.float32) * (1.0 / hw)       # (B, C)
    mx = jnp.max(x, axis=-1).astype(jnp.float32)                    # (B, C)
    gate = _fc_gate(avg, mx, w1_ref, w2_ref)                        # (B, C) f32
    # Gate multiply in the input dtype (no full f32 tile copy for bf16 inputs).
    # NOTE: on v5e (no bf16 VPU) an f32 gate would be free and marginally more
    # accurate; kept uniform for simplicity.
    gate = gate.astype(x.dtype)[:, :, None]
    o_ref[...] = (gate * x).astype(o_ref.dtype)


def _ca_kernel_nhwc(x_ref, w1_ref, w2_ref, o_ref):
    # x_ref / o_ref: (B_blk, HW, C) -- C on the lane axis (lane-dense stores
    # for late-CNN shapes where HW is small / not a multiple of 128).
    x = x_ref[...]
    hw = x.shape[1]
    avg = jnp.sum(x, axis=1, dtype=jnp.float32) * (1.0 / hw)        # (B, C)
    mx = jnp.max(x, axis=1).astype(jnp.float32)                     # (B, C)
    gate = _fc_gate(avg, mx, w1_ref, w2_ref)                        # (B, C) f32
    gate = gate.astype(x.dtype)[:, None, :]                         # (B, 1, C)
    o_ref[...] = (gate * x).astype(o_ref.dtype)


# ------------------------- block-sizing policy ----------------------------- #

def _tpu_policy():
    """Return (target_step_bytes, min_grid_steps, vmem_cap) per chip generation."""
    vmem = 128 << 20
    try:
        vmem = int(getattr(pltpu.get_tpu_info(), "vmem_capacity_bytes", vmem))
    except Exception:
        pass
    kind = ""
    try:
        kind = jax.devices()[0].device_kind.lower()
    except Exception:
        pass
    two_tensorcores = ("v7" in kind) or (vmem <= (80 << 20))
    if two_tensorcores:
        # v7x: 64 MiB VMEM, 2 TCs, 3.2 TB/s HBM -> ~6 MiB blocks and >= 4 grid
        # steps (>= 2 per core after "parallel" sharding) to keep DMA overlap.
        return (6 << 20), 4, (min(vmem, 64 << 20) - (8 << 20))
    # v5e / v6e: single TensorCore, 128 MiB VMEM -> large steps, no step minimum.
    return (12 << 20), 1, (min(vmem, 128 << 20) - (28 << 20))


def _pick_batch_block(n, per_image_bytes, target_bytes, min_grid_steps):
    """Largest batch block whose x-tile fits target_bytes, keeping >= min steps."""
    b = max(1, min(n, target_bytes // max(per_image_bytes, 1)))
    if min_grid_steps > 1:
        b = min(b, max(1, pl.cdiv(n, min_grid_steps)))
    return int(b)


# ----------------------------- driver -------------------------------------- #

def _run_channel_attention(x3, w1, w2, kernel, max_batch_block=None):
    N, d1, d2 = x3.shape
    C_r, C = w1.shape
    assert w2.shape == (C, C_r)

    itemsize = x3.dtype.itemsize
    per_image_bytes = d1 * d2 * itemsize
    target_bytes, min_steps, vmem_cap = _tpu_policy()
    b_blk = _pick_batch_block(N, per_image_bytes, target_bytes, min_steps)
    if max_batch_block is not None:
        b_blk = max(1, min(b_blk, int(max_batch_block)))
    grid = pl.cdiv(N, b_blk)   # ragged tail handled by Pallas block pad/mask

    blk_bytes = b_blk * per_image_bytes
    w_bytes = w1.size * w1.dtype.itemsize + w2.size * w2.dtype.itemsize
    # 2x double-buffered input block + 2x output block + double-buffered weights.
    vmem_needed = 4 * blk_bytes + 4 * w_bytes + (2 << 20)
    vmem_limit = int(min(vmem_cap, max(32 << 20, vmem_needed)))
    # TODO(synk): for very large single images (C*HW bytes >> target_step_bytes)
    # add a spatial tile axis instead of one whole-image block per step.

    cost = pl.CostEstimate(
        flops=int(3 * N * d1 * d2 + 8 * N * C * C_r),
        transcendentals=int(N * C),
        bytes_accessed=int(2 * N * d1 * d2 * itemsize + w_bytes),
    )

    return pl.pallas_call(
        kernel,
        out_shape=jax.ShapeDtypeStruct((N, d1, d2), x3.dtype),
        grid_spec=pltpu.PrefetchScalarGridSpec(
            num_scalar_prefetch=0,
            grid=(grid,),
            in_specs=[
                pl.BlockSpec((b_blk, d1, d2), lambda b: (b, 0, 0)),
                pl.BlockSpec((C_r, C), lambda b: (0, 0)),
                pl.BlockSpec((C, C_r), lambda b: (0, 0)),
            ],
            out_specs=pl.BlockSpec((b_blk, d1, d2), lambda b: (b, 0, 0)),
        ),
        compiler_params=pltpu.CompilerParams(
            dimension_semantics=("parallel",),
            vmem_limit_bytes=vmem_limit,
        ),
        cost_estimate=cost,
    )(x3, w1, w2)


def channel_attention(x, w1, w2, *, max_batch_block=None):
    """NCHW (PyTorch layout): x (N, C, H, W); w1 (C_r, C); w2 (C, C_r)."""
    N, C, H, W = x.shape
    out = _run_channel_attention(x.reshape(N, C, H * W), w1, w2,
                                 _ca_kernel_nchw, max_batch_block)
    return out.reshape(N, C, H, W)


def channel_attention_nhwc(x, w1, w2, *, max_batch_block=None):
    """Channels-last: x (N, H, W, C). Lane-dense loads/stores when HW is small
    or not a multiple of 128 (e.g. 7x7 late-CNN stages). Use when the producer
    is already NHWC; a wrapper-side transpose would cost an extra HBM pass."""
    N, H, W, C = x.shape
    out = _run_channel_attention(x.reshape(N, H * W, C), w1, w2,
                                 _ca_kernel_nhwc, max_batch_block)
    return out.reshape(N, H, W, C)


# --------------------------- pure-JAX references --------------------------- #

def _reference_nchw(x, w1, w2):
    avg = jnp.mean(x, axis=(2, 3))
    mx = jnp.max(x, axis=(2, 3))

    def fc(v):
        return jnp.maximum(v @ w1.T, 0.0) @ w2.T

    gate = jax.nn.sigmoid(fc(avg) + fc(mx))
    return gate[:, :, None, None] * x


def _reference_nhwc(x, w1, w2):
    avg = jnp.mean(x, axis=(1, 2))
    mx = jnp.max(x, axis=(1, 2))

    def fc(v):
        return jnp.maximum(v @ w1.T, 0.0) @ w2.T

    gate = jax.nn.sigmoid(fc(avg) + fc(mx))
    return gate[:, None, None, :] * x


if __name__ == "__main__":
    key = jax.random.PRNGKey(0)
    kx, k1, k2, k3, k4 = jax.random.split(key, 5)

    # --- Test 1: NCHW, batch divisible by the block ---
    N, C, H, W = 8, 64, 16, 16
    reduction = 16
    C_r = C // reduction
    x = jax.random.normal(kx, (N, C, H, W), dtype=jnp.float32)
    w1 = jax.random.normal(k1, (C_r, C), dtype=jnp.float32) * 0.1   # Conv2d 1x1, bias=False
    w2 = jax.random.normal(k2, (C, C_r), dtype=jnp.float32) * 0.1
    y = jax.block_until_ready(channel_attention(x, w1, w2))
    assert y.shape == (N, C, H, W)
    assert jnp.allclose(y, _reference_nchw(x, w1, w2), atol=1e-5, rtol=1e-5)

    # --- Test 2: ragged batch (N=5, block=2) exercises cdiv grid + masked tail ---
    xr = jax.random.normal(k3, (5, C, 8, 8), dtype=jnp.float32)
    yr = jax.block_until_ready(channel_attention(xr, w1, w2, max_batch_block=2))
    assert jnp.allclose(yr, _reference_nchw(xr, w1, w2), atol=1e-5, rtol=1e-5)

    # --- Test 3: channels-last variant (lane-dense for small 7x7 spatial) ---
    Cn, Crn = 128, 128 // reduction
    k5, k6, k7 = jax.random.split(k4, 3)
    xn = jax.random.normal(k5, (4, 7, 7, Cn), dtype=jnp.float32)
    w1n = jax.random.normal(k6, (Crn, Cn), dtype=jnp.float32) * 0.1
    w2n = jax.random.normal(k7, (Cn, Crn), dtype=jnp.float32) * 0.1
    yn = jax.block_until_ready(channel_attention_nhwc(xn, w1n, w2n))
    assert jnp.allclose(yn, _reference_nhwc(xn, w1n, w2n), atol=1e-5, rtol=1e-5)

    print("KERNEL_OK")
</pallas_src>

<mosaic_0001>
module attributes {stable_mosaic.version = 11 : i64} {
  func.func @_ca_kernel_nchw(%arg0: i32, %arg1: memref<8x64x256xf32, #tpu.memory_space<vmem>>, %arg2: memref<4x64xf32, #tpu.memory_space<vmem>>, %arg3: memref<64x4xf32, #tpu.memory_space<vmem>>, %arg4: memref<8x64x256xf32, #tpu.memory_space<vmem>>) attributes {dimension_semantics = [#tpu.dimension_semantics<parallel>], iteration_bounds = array<i64: 1>, scalar_prefetch = 0 : i64, scratch_operands = 0 : i64, tpu.core_type = #tpu.core_type<tc>, window_params = [{transform_indices = @transform_0, window_bounds = array<i64: 8, 64, 256>}, {pipeline_mode = #tpu.pipeline_mode<synchronous>, transform_indices = @transform_1, window_bounds = array<i64: 4, 64>}, {pipeline_mode = #tpu.pipeline_mode<synchronous>, transform_indices = @transform_2, window_bounds = array<i64: 64, 4>}, {transform_indices = @transform_3, window_bounds = array<i64: 8, 64, 256>}]} {
    %c0 = arith.constant 0 : index
    %c0_0 = arith.constant 0 : index
    %c0_1 = arith.constant 0 : index
    %0 = vector.load %arg1[%c0, %c0_0, %c0_1] : memref<8x64x256xf32, #tpu.memory_space<vmem>>, vector<8x64x256xf32>
    %cst = arith.constant dense<0.000000e+00> : vector<8x64xf32>
    %1 = vector.multi_reduction <add>, %0, %cst [2] : vector<8x64x256xf32> to vector<8x64xf32>
    %cst_2 = arith.constant 3.906250e-03 : f32
    %2 = vector.broadcast %cst_2 : f32 to vector<8x64xf32>
    %3 = arith.mulf %1, %2 : vector<8x64xf32>
    %cst_3 = arith.constant dense<0xFF800000> : vector<8x64xf32>
    %4 = vector.multi_reduction <maximumf>, %0, %cst_3 [2] : vector<8x64x256xf32> to vector<8x64xf32>
    %c0_4 = arith.constant 0 : index
    %c0_5 = arith.constant 0 : index
    %5 = vector.load %arg2[%c0_4, %c0_5] : memref<4x64xf32, #tpu.memory_space<vmem>>, vector<4x64xf32>
    %c0_6 = arith.constant 0 : index
    %c0_7 = arith.constant 0 : index
    %6 = vector.load %arg3[%c0_6, %c0_7] : memref<64x4xf32, #tpu.memory_space<vmem>>, vector<64x4xf32>
    %cst_8 = arith.constant dense<0.000000e+00> : vector<8x4xf32>
    %7 = tpu.matmul %3, %5, %cst_8 {dimension_numbers = #tpu.dot_dimension_numbers<[1], [1], [0], [0], [0, 0, 1, 0], [], []>} : vector<8x64xf32>, vector<4x64xf32>, vector<8x4xf32> -> vector<8x4xf32>
    %cst_9 = arith.constant 0.000000e+00 : f32
    %8 = vector.broadcast %cst_9 : f32 to vector<8x4xf32>
    %9 = arith.maximumf %7, %8 : vector<8x4xf32>
    %cst_10 = arith.constant dense<0.000000e+00> : vector<8x64xf32>
    %10 = tpu.matmul %9, %6, %cst_10 {dimension_numbers = #tpu.dot_dimension_numbers<[1], [1], [0], [0], [0, 0, 1, 0], [], []>} : vector<8x4xf32>, vector<64x4xf32>, vector<8x64xf32> -> vector<8x64xf32>
    %cst_11 = arith.constant dense<0.000000e+00> : vector<8x4xf32>
    %11 = tpu.matmul %4, %5, %cst_11 {dimension_numbers = #tpu.dot_dimension_numbers<[1], [1], [0], [0], [0, 0, 1, 0], [], []>} : vector<8x64xf32>, vector<4x64xf32>, vector<8x4xf32> -> vector<8x4xf32>
    %cst_12 = arith.constant 0.000000e+00 : f32
    %12 = vector.broadcast %cst_12 : f32 to vector<8x4xf32>
    %13 = arith.maximumf %11, %12 : vector<8x4xf32>
    %cst_13 = arith.constant dense<0.000000e+00> : vector<8x64xf32>
    %14 = tpu.matmul %13, %6, %cst_13 {dimension_numbers = #tpu.dot_dimension_numbers<[1], [1], [0], [0], [0, 0, 1, 0], [], []>} : vector<8x4xf32>, vector<64x4xf32>, vector<8x64xf32> -> vector<8x64xf32>
    %15 = arith.addf %10, %14 : vector<8x64xf32>
    %16 = arith.negf %15 : vector<8x64xf32>
    %17 = math.exp %16 : vector<8x64xf32>
    %cst_14 = arith.constant 1.000000e+00 : f32
    %18 = vector.broadcast %cst_14 : f32 to vector<8x64xf32>
    %19 = arith.addf %18, %17 : vector<8x64xf32>
    %20 = arith.divf %18, %19 : vector<8x64xf32>
    %21 = vector.shape_cast %20 : vector<8x64xf32> to vector<8x64x1xf32>
    %22 = vector.broadcast %21 : vector<8x64x1xf32> to vector<8x64x256xf32>
    %23 = arith.mulf %22, %0 : vector<8x64x256xf32>
    %c0_15 = arith.constant 0 : index
    %c0_16 = arith.constant 0 : index
    %c0_17 = arith.constant 0 : index
    %24 = vector.load %arg4[%c0_15, %c0_16, %c0_17] : memref<8x64x256xf32, #tpu.memory_space<vmem>>, vector<8x64x256xf32>
    tpu.vector_store %arg4[%c0_15, %c0_16, %c0_17], %23 {strides = array<i32>} : memref<8x64x256xf32, #tpu.memory_space<vmem>>, vector<8x64x256xf32>,
    return
  }
  func.func @transform_0(%arg0: i32) -> (i32, i32, i32) {
    %c0_i32 = arith.constant 0 : i32
    %c0_i32_0 = arith.constant 0 : i32
    %c0_i32_1 = arith.constant 0 : i32
    return %arg0, %c0_i32, %c0_i32_0 : i32, i32, i32
  }
  func.func @transform_1(%arg0: i32) -> (i32, i32) {
    %c0_i32 = arith.constant 0 : i32
    %c0_i32_0 = arith.constant 0 : i32
    %c0_i32_1 = arith.constant 0 : i32
    return %c0_i32, %c0_i32_0 : i32, i32
  }
  func.func @transform_2(%arg0: i32) -> (i32, i32) {
    %c0_i32 = arith.constant 0 : i32
    %c0_i32_0 = arith.constant 0 : i32
    %c0_i32_1 = arith.constant 0 : i32
    return %c0_i32, %c0_i32_0 : i32, i32
  }
  func.func @transform_3(%arg0: i32) -> (i32, i32, i32) {
    %c0_i32 = arith.constant 0 : i32
    %c0_i32_0 = arith.constant 0 : i32
    %c0_i32_1 = arith.constant 0 : i32
    return %arg0, %c0_i32, %c0_i32_0 : i32, i32, i32
  }
}

</mosaic_0001>

<llo_original>
// kernel: tpu_custom_call.1
$region0: #{tpu_custom_call.1}
  #allocation0 [shape = 'u32[]', space=smem, size = 0x4, offset = 0x4, fixed_abs, tag = 'smem constant byte address 0x4 - core index']
  #allocation1 [shape = 'u32[72,128]{1,0:T(1,128)}', space=vmem, size = 0x9000, scoped, tag = 'internal scratch']
  %s0 = inlined_call_operand.hbm [shape: f32[8,64,256], index: 0, kind: input, shape index: {}]
  %s1 = inlined_call_operand.vmem [shape: f32[4,64], index: 1, kind: input, shape index: {}]
  %s2 = inlined_call_operand.vmem [shape: f32[64,4], index: 2, kind: input, shape index: {}]
  %s3 = inlined_call_operand.hbm [shape: f32[8,64,256], index: 3, kind: output, shape index: {}]
  %s4 = sld [smem:[#allocation0]]
  $region26: #{tpu_custom_call.1} parent=0
    _
  %s6 = ssub.s32 1, %s4
  %s7 = scalar_select 0, %s6, %s4
  $region1: #{tpu_custom_call.1} parent=0
    #allocation2 [shape = 'u8[524288]{0}', space=vmem, size = 0x80000, scoped, tag = 'input window, operand 0, single buffered']
    #allocation3 [shape = 's32[1]{0}', space=sflag, size = 0x4, scoped, tag = 'scoped memory for tpu_custom_call.1']
    #allocation4 [shape = 's32[1]{0}', space=sflag, size = 0x4, scoped, tag = 'scoped memory for tpu_custom_call.1']
    #allocation5 [shape = 'u8[524288]{0}', space=vmem, size = 0x80000, scoped, tag = 'output window, operand 0, single buffered']
    %8 = vsyncpa [#allocation3], 0
    %9 = vsyncpa [#allocation4], 0
    // Predicated region
    $region2: #{tpu_custom_call.1} parent=1 // pred_check
      _
    $region3: #{tpu_custom_call.1} parent=1 // pred_check_branch
      %11 = sbr.rel (0) target = $region5
    $region4: #{tpu_custom_call.1} parent=1 // pred_region
      %13 = vsyncadd [#allocation3], 0
      %s14 = sshll.u32 %s0, 4
      %s15 = int_to_ptr.hbm [resolvable:$true] %s14
      %s16 = sshll.u32 [#allocation2], 4
      %s17 = int_to_ptr.vmem [resolvable:$true] %s16
      %22 = dma.hbm_to_vmem [thread:$0]  %s15, 16384, %s17, [#allocation3], 256, 256, 16
    $region5: #{tpu_custom_call.1} parent=1 // pred_fallthru
      _
    // Predicated region
    $region6: #{tpu_custom_call.1} parent=1 // pred_check
      _
    $region7: #{tpu_custom_call.1} parent=1 // pred_check_branch
      %24 = sbr.rel (0) target = $region9
    $region8: #{tpu_custom_call.1} parent=1 // pred_region
      _
    $region9: #{tpu_custom_call.1} parent=1 // pred_fallthru
      _
    // Predicated region
    $region10: #{tpu_custom_call.1} parent=1 // pred_check
      _
    $region11: #{tpu_custom_call.1} parent=1 // pred_check_branch
      %26 = sbr.rel (0) target = $region13
    $region12: #{tpu_custom_call.1} parent=1 // pred_region
      _
    $region13: #{tpu_custom_call.1} parent=1 // pred_fallthru
      _
    // Predicated region
    $region14: #{tpu_custom_call.1} parent=1 // pred_check
      _
    $region15: #{tpu_custom_call.1} parent=1 // pred_check_branch
      %28 = sbr.rel (0) target = $region17
    $region16: #{tpu_custom_call.1} parent=1 // pred_region
      %30 = dma.done [#allocation3], 16384
    $region17: #{tpu_custom_call.1} parent=1 // pred_fallthru
      _
    %v31 = vld [vmem:[#allocation2] sm:$0xff]
    %v32 = vld [vmem:[#allocation2 + $0x8] sm:$0xff]
    %v33 = vld [vmem:[#allocation2 + $0x10] sm:$0xff]
    %v34 = vld [vmem:[#allocation2 + $0x18] sm:$0xff]
    %v35 = vld [vmem:[#allocation2 + $0x20] sm:$0xff]
    %v36 = vld [vmem:[#allocation2 + $0x28] sm:$0xff]
    %v37 = vld [vmem:[#allocation2 + $0x30] sm:$0xff]
    %v38 = vld [vmem:[#allocation2 + $0x38] sm:$0xff]
    %v39 = vld [vmem:[#allocation2 + $0x40] sm:$0xff]
    %v40 = vld [vmem:[#allocation2 + $0x48] sm:$0xff]
    %v41 = vld [vmem:[#allocation2 + $0x50] sm:$0xff]
    %v42 = vld [vmem:[#allocation2 + $0x58] sm:$0xff]
    %v43 = vld [vmem:[#allocation2 + $0x60] sm:$0xff]
    %v44 = vld [vmem:[#allocation2 + $0x68] sm:$0xff]
    %v45 = vld [vmem:[#allocation2 + $0x70] sm:$0xff]
    %v46 = vld [vmem:[#allocation2 + $0x78] sm:$0xff]
    %v47 = vld [vmem:[#allocation2 + $0x80] sm:$0xff]
    %v48 = vld [vmem:[#allocation2 + $0x88] sm:$0xff]
    %v49 = vld [vmem:[#allocation2 + $0x90] sm:$0xff]
    %v50 = vld [vmem:[#allocation2 + $0x98] sm:$0xff]
    %v51 = vld [vmem:[#allocation2 + $0xa0] sm:$0xff]
    %v52 = vld [vmem:[#allocation2 + $0xa8] sm:$0xff]
    %v53 = vld [vmem:[#allocation2 + $0xb0] sm:$0xff]
    %v54 = vld [vmem:[#allocation2 + $0xb8] sm:$0xff]
    %v55 = vld [vmem:[#allocation2 + $0xc0] sm:$0xff]
    %v56 = vld [vmem:[#allocation2 + $0xc8] sm:$0xff]
    %v57 = vld [vmem:[#allocation2 + $0xd0] sm:$0xff]
    %v58 = vld [vmem:[#allocation2 + $0xd8] sm:$0xff]
    %v59 = vld [vmem:[#allocation2 + $0xe0] sm:$0xff]
    %v60 = vld [vmem:[#allocation2 + $0xe8] sm:$0xff]
    %v61 = vld [vmem:[#allocation2 + $0xf0] sm:$0xff]
    %v62 = vld [vmem:[#allocation2 + $0xf8] sm:$0xff]
    %v63 = vld [vmem:[#allocation2 + $0x100] sm:$0xff]
    %v64 = vld [vmem:[#allocation2 + $0x108] sm:$0xff]
    %v65 = vld [vmem:[#allocation2 + $0x110] sm:$0xff]
    %v66 = vld [vmem:[#allocation2 + $0x118] sm:$0xff]
    %v67 = vld [vmem:[#allocation2 + $0x120] sm:$0xff]
    %v68 = vld [vmem:[#allocation2 + $0x128] sm:$0xff]
    %v69 = vld [vmem:[#allocation2 + $0x130] sm:$0xff]
    %v70 = vld [vmem:[#allocation2 + $0x138] sm:$0xff]
    %v71 = vld [vmem:[#allocation2 + $0x140] sm:$0xff]
    %v72 = vld [vmem:[#allocation2 + $0x148] sm:$0xff]
    %v73 = vld [vmem:[#allocation2 + $0x150] sm:$0xff]
    %v74 = vld [vmem:[#allocation2 + $0x158] sm:$0xff]
    %v75 = vld [vmem:[#allocation2 + $0x160] sm:$0xff]
    %v76 = vld [vmem:[#allocation2 + $0x168] sm:$0xff]
    %v77 = vld [vmem:[#allocation2 + $0x170] sm:$0xff]
    %v78 = vld [vmem:[#allocation2 + $0x178] sm:$0xff]
    %v79 = vld [vmem:[#allocation2 + $0x180] sm:$0xff]
    %v80 = vld [vmem:[#allocation2 + $0x188] sm:$0xff]
    %v81 = vld [vmem:[#allocation2 + $0x190] sm:$0xff]
    %v82 = vld [vmem:[#allocation2 + $0x198] sm:$0xff]
    %v83 = vld [vmem:[#allocation2 + $0x1a0] sm:$0xff]
    %v84 = vld [vmem:[#allocation2 + $0x1a8] sm:$0xff]
    %v85 = vld [vmem:[#allocation2 + $0x1b0] sm:$0xff]
    %v86 = vld [vmem:[#allocation2 + $0x1b8] sm:$0xff]
    %v87 = vld [vmem:[#allocation2 + $0x1c0] sm:$0xff]
    %v88 = vld [vmem:[#allocation2 + $0x1c8] sm:$0xff]
    %v89 = vld [vmem:[#allocation2 + $0x1d0] sm:$0xff]
    %v90 = vld [vmem:[#allocation2 + $0x1d8] sm:$0xff]
    %v91 = vld [vmem:[#allocation2 + $0x1e0] sm:$0xff]
    %v92 = vld [vmem:[#allocation2 + $0x1e8] sm:$0xff]
    %v93 = vld [vmem:[#allocation2 + $0x1f0] sm:$0xff]
    %v94 = vld [vmem:[#allocation2 + $0x1f8] sm:$0xff]
    %v95 = vld [vmem:[#allocation2 + $0x200] sm:$0xff]
    %v96 = vld [vmem:[#allocation2 + $0x208] sm:$0xff]
    %v97 = vld [vmem:[#allocation2 + $0x210] sm:$0xff]
    %v98 = vld [vmem:[#allocation2 + $0x218] sm:$0xff]
    %v99 = vld [vmem:[#allocation2 + $0x220] sm:$0xff]
    %v100 = vld [vmem:[#allocation2 + $0x228] sm:$0xff]
    %v101 = vld [vmem:[#allocation2 + $0x230] sm:$0xff]
    %v102 = vld [vmem:[#allocation2 + $0x238] sm:$0xff]
    %v103 = vld [vmem:[#allocation2 + $0x240] sm:$0xff]
    %v104 = vld [vmem:[#allocation2 + $0x248] sm:$0xff]
    %v105 = vld [vmem:[#allocation2 + $0x250] sm:$0xff]
    %v106 = vld [vmem:[#allocation2 + $0x258] sm:$0xff]
    %v107 = vld [vmem:[#allocation2 + $0x260] sm:$0xff]
    %v108 = vld [vmem:[#allocation2 + $0x268] sm:$0xff]
    %v109 = vld [vmem:[#allocation2 + $0x270] sm:$0xff]
    %v110 = vld [vmem:[#allocation2 + $0x278] sm:$0xff]
    %v111 = vld [vmem:[#allocation2 + $0x280] sm:$0xff]
    %v112 = vld [vmem:[#allocation2 + $0x288] sm:$0xff]
    %v113 = vld [vmem:[#allocation2 + $0x290] sm:$0xff]
    %v114 = vld [vmem:[#allocation2 + $0x298] sm:$0xff]
    %v115 = vld [vmem:[#allocation2 + $0x2a0] sm:$0xff]
    %v116 = vld [vmem:[#allocation2 + $0x2a8] sm:$0xff]
    %v117 = vld [vmem:[#allocation2 + $0x2b0] sm:$0xff]
    %v118 = vld [vmem:[#allocation2 + $0x2b8] sm:$0xff]
    %v119 = vld [vmem:[#allocation2 + $0x2c0] sm:$0xff]
    %v120 = vld [vmem:[#allocation2 + $0x2c8] sm:$0xff]
    %v121 = vld [vmem:[#allocation2 + $0x2d0] sm:$0xff]
    %v122 = vld [vmem:[#allocation2 + $0x2d8] sm:$0xff]
    %v123 = vld [vmem:[#allocation2 + $0x2e0] sm:$0xff]
    %v124 = vld [vmem:[#allocation2 + $0x2e8] sm:$0xff]
    %v125 = vld [vmem:[#allocation2 + $0x2f0] sm:$0xff]
    %v126 = vld [vmem:[#allocation2 + $0x2f8] sm:$0xff]
    %v127 = vld [vmem:[#allocation2 + $0x300] sm:$0xff]
    %v128 = vld [vmem:[#allocation2 + $0x308] sm:$0xff]
    %v129 = vld [vmem:[#allocation2 + $0x310] sm:$0xff]
    %v130 = vld [vmem:[#allocation2 + $0x318] sm:$0xff]
    %v131 = vld [vmem:[#allocation2 + $0x320] sm:$0xff]
    %v132 = vld [vmem:[#allocation2 + $0x328] sm:$0xff]
    %v133 = vld [vmem:[#allocation2 + $0x330] sm:$0xff]
    %v134 = vld [vmem:[#allocation2 + $0x338] sm:$0xff]
    %v135 = vld [vmem:[#allocation2 + $0x340] sm:$0xff]
    %v136 = vld [vmem:[#allocation2 + $0x348] sm:$0xff]
    %v137 = vld [vmem:[#allocation2 + $0x350] sm:$0xff]
    %v138 = vld [vmem:[#allocation2 + $0x358] sm:$0xff]
    %v139 = vld [vmem:[#allocation2 + $0x360] sm:$0xff]
    %v140 = vld [vmem:[#allocation2 + $0x368] sm:$0xff]
    %v141 = vld [vmem:[#allocation2 + $0x370] sm:$0xff]
    %v142 = vld [vmem:[#allocation2 + $0x378] sm:$0xff]
    %v143 = vld [vmem:[#allocation2 + $0x380] sm:$0xff]
    %v144 = vld [vmem:[#allocation2 + $0x388] sm:$0xff]
    %v145 = vld [vmem:[#allocation2 + $0x390] sm:$0xff]
    %v146 = vld [vmem:[#allocation2 + $0x398] sm:$0xff]
    %v147 = vld [vmem:[#allocation2 + $0x3a0] sm:$0xff]
    %v148 = vld [vmem:[#allocation2 + $0x3a8] sm:$0xff]
    %v149 = vld [vmem:[#allocation2 + $0x3b0] sm:$0xff]
    %v150 = vld [vmem:[#allocation2 + $0x3b8] sm:$0xff]
    %v151 = vld [vmem:[#allocation2 + $0x3c0] sm:$0xff]
    %v152 = vld [vmem:[#allocation2 + $0x3c8] sm:$0xff]
    %v153 = vld [vmem:[#allocation2 + $0x3d0] sm:$0xff]
    %v154 = vld [vmem:[#allocation2 + $0x3d8] sm:$0xff]
    %v155 = vld [vmem:[#allocation2 + $0x3e0] sm:$0xff]
    %v156 = vld [vmem:[#allocation2 + $0x3e8] sm:$0xff]
    %v157 = vld [vmem:[#allocation2 + $0x3f0] sm:$0xff]
    %v158 = vld [vmem:[#allocation2 + $0x3f8] sm:$0xff]
    %v159 = vadd.f32 %v31, %v32
    %160 = vadd.xlane.f32.xlu0 %v159
    %v161 = vpop.xlane.xlu0 %160
    %v162 = vadd.f32 %v33, %v34
    %163 = vadd.xlane.f32.xlu0 %v162
    %v164 = vpop.xlane.xlu0 %163
    %v165 = vadd.f32 %v35, %v36
    %166 = vadd.xlane.f32.xlu0 %v165
    %v167 = vpop.xlane.xlu0 %166
    %v168 = vadd.f32 %v37, %v38
    %169 = vadd.xlane.f32.xlu0 %v168
    %v170 = vpop.xlane.xlu0 %169
    %v171 = vadd.f32 %v39, %v40
    %172 = vadd.xlane.f32.xlu0 %v171
    %v173 = vpop.xlane.xlu0 %172
    %v174 = vadd.f32 %v41, %v42
    %175 = vadd.xlane.f32.xlu0 %v174
    %v176 = vpop.xlane.xlu0 %175
    %v177 = vadd.f32 %v43, %v44
    %178 = vadd.xlane.f32.xlu0 %v177
    %v179 = vpop.xlane.xlu0 %178
    %v180 = vadd.f32 %v45, %v46
    %181 = vadd.xlane.f32.xlu0 %v180
    %v182 = vpop.xlane.xlu0 %181
    %v183 = vadd.f32 %v47, %v48
    %184 = vadd.xlane.f32.xlu0 %v183
    %v185 = vpop.xlane.xlu0 %184
    %v186 = vadd.f32 %v49, %v50
    %187 = vadd.xlane.f32.xlu0 %v186
    %v188 = vpop.xlane.xlu0 %187
    %v189 = vadd.f32 %v51, %v52
    %190 = vadd.xlane.f32.xlu0 %v189
    %v191 = vpop.xlane.xlu0 %190
    %v192 = vadd.f32 %v53, %v54
    %193 = vadd.xlane.f32.xlu0 %v192
    %v194 = vpop.xlane.xlu0 %193
    %v195 = vadd.f32 %v55, %v56
    %196 = vadd.xlane.f32.xlu0 %v195
    %v197 = vpop.xlane.xlu0 %196
    %v198 = vadd.f32 %v57, %v58
    %199 = vadd.xlane.f32.xlu0 %v198
    %v200 = vpop.xlane.xlu0 %199
    %v201 = vadd.f32 %v59, %v60
    %202 = vadd.xlane.f32.xlu0 %v201
    %v203 = vpop.xlane.xlu0 %202
    %v204 = vadd.f32 %v61, %v62
    %205 = vadd.xlane.f32.xlu0 %v204
    %v206 = vpop.xlane.xlu0 %205
    %v207 = vadd.f32 %v63, %v64
    %208 = vadd.xlane.f32.xlu0 %v207
    %v209 = vpop.xlane.xlu0 %208
    %v210 = vadd.f32 %v65, %v66
    %211 = vadd.xlane.f32.xlu0 %v210
    %v212 = vpop.xlane.xlu0 %211
    %v213 = vadd.f32 %v67, %v68
    %214 = vadd.xlane.f32.xlu0 %v213
    %v215 = vpop.xlane.xlu0 %214
    %v216 = vadd.f32 %v69, %v70
    %217 = vadd.xlane.f32.xlu0 %v216
    %v218 = vpop.xlane.xlu0 %217
    %v219 = vadd.f32 %v71, %v72
    %220 = vadd.xlane.f32.xlu0 %v219
    %v221 = vpop.xlane.xlu0 %220
    %v222 = vadd.f32 %v73, %v74
    %223 = vadd.xlane.f32.xlu0 %v222
    %v224 = vpop.xlane.xlu0 %223
    %v225 = vadd.f32 %v75, %v76
    %226 = vadd.xlane.f32.xlu0 %v225
    %v227 = vpop.xlane.xlu0 %226
    %v228 = vadd.f32 %v77, %v78
    %229 = vadd.xlane.f32.xlu0 %v228
    %v230 = vpop.xlane.xlu0 %229
    %v231 = vadd.f32 %v79, %v80
    %232 = vadd.xlane.f32.xlu0 %v231
    %v233 = vpop.xlane.xlu0 %232
    %v234 = vadd.f32 %v81, %v82
    %235 = vadd.xlane.f32.xlu0 %v234
    %v236 = vpop.xlane.xlu0 %235
    %v237 = vadd.f32 %v83, %v84
    %238 = vadd.xlane.f32.xlu0 %v237
    %v239 = vpop.xlane.xlu0 %238
    %v240 = vadd.f32 %v85, %v86
    %241 = vadd.xlane.f32.xlu0 %v240
    %v242 = vpop.xlane.xlu0 %241
    %v243 = vadd.f32 %v87, %v88
    %244 = vadd.xlane.f32.xlu0 %v243
    %v245 = vpop.xlane.xlu0 %244
    %v246 = vadd.f32 %v89, %v90
    %247 = vadd.xlane.f32.xlu0 %v246
    %v248 = vpop.xlane.xlu0 %247
    %v249 = vadd.f32 %v91, %v92
    %250 = vadd.xlane.f32.xlu0 %v249
    %v251 = vpop.xlane.xlu0 %250
    %v252 = vadd.f32 %v93, %v94
    %253 = vadd.xlane.f32.xlu0 %v252
    %v254 = vpop.xlane.xlu0 %253
    %v255 = vadd.f32 %v95, %v96
    %256 = vadd.xlane.f32.xlu0 %v255
    %v257 = vpop.xlane.xlu0 %256
    %v258 = vadd.f32 %v97, %v98
    %259 = vadd.xlane.f32.xlu0 %v258
    %v260 = vpop.xlane.xlu0 %259
    %v261 = vadd.f32 %v99, %v100
    %262 = vadd.xlane.f32.xlu0 %v261
    %v263 = vpop.xlane.xlu0 %262
    %v264 = vadd.f32 %v101, %v102
    %265 = vadd.xlane.f32.xlu0 %v264
    %v266 = vpop.xlane.xlu0 %265
    %v267 = vadd.f32 %v103, %v104
    %268 = vadd.xlane.f32.xlu0 %v267
    %v269 = vpop.xlane.xlu0 %268
    %v270 = vadd.f32 %v105, %v106
    %271 = vadd.xlane.f32.xlu0 %v270
    %v272 = vpop.xlane.xlu0 %271
    %v273 = vadd.f32 %v107, %v108
    %274 = vadd.xlane.f32.xlu0 %v273
    %v275 = vpop.xlane.xlu0 %274
    %v276 = vadd.f32 %v109, %v110
    %277 = vadd.xlane.f32.xlu0 %v276
    %v278 = vpop.xlane.xlu0 %277
    %v279 = vadd.f32 %v111, %v112
    %280 = vadd.xlane.f32.xlu0 %v279
    %v281 = vpop.xlane.xlu0 %280
    %v282 = vadd.f32 %v113, %v114
    %283 = vadd.xlane.f32.xlu0 %v282
    %v284 = vpop.xlane.xlu0 %283
    %v285 = vadd.f32 %v115, %v116
    %286 = vadd.xlane.f32.xlu0 %v285
    %v287 = vpop.xlane.xlu0 %286
    %v288 = vadd.f32 %v117, %v118
    %289 = vadd.xlane.f32.xlu0 %v288
    %v290 = vpop.xlane.xlu0 %289
    %v291 = vadd.f32 %v119, %v120
    %292 = vadd.xlane.f32.xlu0 %v291
    %v293 = vpop.xlane.xlu0 %292
    %v294 = vadd.f32 %v121, %v122
    %295 = vadd.xlane.f32.xlu0 %v294
    %v296 = vpop.xlane.xlu0 %295
    %v297 = vadd.f32 %v123, %v124
    %298 = vadd.xlane.f32.xlu0 %v297
    %v299 = vpop.xlane.xlu0 %298
    %v300 = vadd.f32 %v125, %v126
    %301 = vadd.xlane.f32.xlu0 %v300
    %v302 = vpop.xlane.xlu0 %301
    %v303 = vadd.f32 %v127, %v128
    %304 = vadd.xlane.f32.xlu0 %v303
    %v305 = vpop.xlane.xlu0 %304
    %v306 = vadd.f32 %v129, %v130
    %307 = vadd.xlane.f32.xlu0 %v306
    %v308 = vpop.xlane.xlu0 %307
    %v309 = vadd.f32 %v131, %v132
    %310 = vadd.xlane.f32.xlu0 %v309
    %v311 = vpop.xlane.xlu0 %310
    %v312 = vadd.f32 %v133, %v134
    %313 = vadd.xlane.f32.xlu0 %v312
    %v314 = vpop.xlane.xlu0 %313
    %v315 = vadd.f32 %v135, %v136
    %316 = vadd.xlane.f32.xlu0 %v315
    %v317 = vpop.xlane.xlu0 %316
    %v318 = vadd.f32 %v137, %v138
    %319 = vadd.xlane.f32.xlu0 %v318
    %v320 = vpop.xlane.xlu0 %319
    %v321 = vadd.f32 %v139, %v140
    %322 = vadd.xlane.f32.xlu0 %v321
    %v323 = vpop.xlane.xlu0 %322
    %v324 = vadd.f32 %v141, %v142
    %325 = vadd.xlane.f32.xlu0 %v324
    %v326 = vpop.xlane.xlu0 %325
    %v327 = vadd.f32 %v143, %v144
    %328 = vadd.xlane.f32.xlu0 %v327
    %v329 = vpop.xlane.xlu0 %328
    %v330 = vadd.f32 %v145, %v146
    %331 = vadd.xlane.f32.xlu0 %v330
    %v332 = vpop.xlane.xlu0 %331
    %v333 = vadd.f32 %v147, %v148
    %334 = vadd.xlane.f32.xlu0 %v333
    %v335 = vpop.xlane.xlu0 %334
    %v336 = vadd.f32 %v149, %v150
    %337 = vadd.xlane.f32.xlu0 %v336
    %v338 = vpop.xlane.xlu0 %337
    %v339 = vadd.f32 %v151, %v152
    %340 = vadd.xlane.f32.xlu0 %v339
    %v341 = vpop.xlane.xlu0 %340
    %v342 = vadd.f32 %v153, %v154
    %343 = vadd.xlane.f32.xlu0 %v342
    %v344 = vpop.xlane.xlu0 %343
    %v345 = vadd.f32 %v155, %v156
    %346 = vadd.xlane.f32.xlu0 %v345
    %v347 = vpop.xlane.xlu0 %346
    %v348 = vadd.f32 %v157, %v158
    %349 = vadd.xlane.f32.xlu0 %v348
    %v350 = vpop.xlane.xlu0 %349
    %v351 = vmul.f32 %v161, 0.00390625
    %v352 = vmul.f32 %v164, 0.00390625
    %v353 = vmul.f32 %v167, 0.00390625
    %v354 = vmul.f32 %v170, 0.00390625
    %v355 = vmul.f32 %v173, 0.00390625
    %v356 = vmul.f32 %v176, 0.00390625
    %v357 = vmul.f32 %v179, 0.00390625
    %v358 = vmul.f32 %v182, 0.00390625
    %v359 = vmul.f32 %v185, 0.00390625
    %v360 = vmul.f32 %v188, 0.00390625
    %v361 = vmul.f32 %v191, 0.00390625
    %v362 = vmul.f32 %v194, 0.00390625
    %v363 = vmul.f32 %v197, 0.00390625
    %v364 = vmul.f32 %v200, 0.00390625
    %v365 = vmul.f32 %v203, 0.00390625
    %v366 = vmul.f32 %v206, 0.00390625
    %v367 = vmul.f32 %v209, 0.00390625
    %v368 = vmul.f32 %v212, 0.00390625
    %v369 = vmul.f32 %v215, 0.00390625
    %v370 = vmul.f32 %v218, 0.00390625
    %v371 = vmul.f32 %v221, 0.00390625
    %v372 = vmul.f32 %v224, 0.00390625
    %v373 = vmul.f32 %v227, 0.00390625
    %v374 = vmul.f32 %v230, 0.00390625
    %v375 = vmul.f32 %v233, 0.00390625
    %v376 = vmul.f32 %v236, 0.00390625
    %v377 = vmul.f32 %v239, 0.00390625
    %v378 = vmul.f32 %v242, 0.00390625
    %v379 = vmul.f32 %v245, 0.00390625
    %v380 = vmul.f32 %v248, 0.00390625
    %v381 = vmul.f32 %v251, 0.00390625
    %v382 = vmul.f32 %v254, 0.00390625
    %v383 = vmul.f32 %v257, 0.00390625
    %v384 = vmul.f32 %v260, 0.00390625
    %v385 = vmul.f32 %v263, 0.00390625
    %v386 = vmul.f32 %v266, 0.00390625
    %v387 = vmul.f32 %v269, 0.00390625
    %v388 = vmul.f32 %v272, 0.00390625
    %v389 = vmul.f32 %v275, 0.00390625
    %v390 = vmul.f32 %v278, 0.00390625
    %v391 = vmul.f32 %v281, 0.00390625
    %v392 = vmul.f32 %v284, 0.00390625
    %v393 = vmul.f32 %v287, 0.00390625
    %v394 = vmul.f32 %v290, 0.00390625
    %v395 = vmul.f32 %v293, 0.00390625
    %v396 = vmul.f32 %v296, 0.00390625
    %v397 = vmul.f32 %v299, 0.00390625
    %v398 = vmul.f32 %v302, 0.00390625
    %v399 = vmul.f32 %v305, 0.00390625
    %v400 = vmul.f32 %v308, 0.00390625
    %v401 = vmul.f32 %v311, 0.00390625
    %v402 = vmul.f32 %v314, 0.00390625
    %v403 = vmul.f32 %v317, 0.00390625
    %v404 = vmul.f32 %v320, 0.00390625
    %v405 = vmul.f32 %v323, 0.00390625
    %v406 = vmul.f32 %v326, 0.00390625
    %v407 = vmul.f32 %v329, 0.00390625
    %v408 = vmul.f32 %v332, 0.00390625
    %v409 = vmul.f32 %v335, 0.00390625
    %v410 = vmul.f32 %v338, 0.00390625
    %v411 = vmul.f32 %v341, 0.00390625
    %v412 = vmul.f32 %v344, 0.00390625
    %v413 = vmul.f32 %v347, 0.00390625
    %v414 = vmul.f32 %v350, 0.00390625
    %v415 = vmax.f32 %v31, %v32
    %416 = vmax.xlane.f32.xlu0 %v415
    %v417 = vpop.xlane.xlu0 %416
    %v418 = vmax.f32 %v33, %v34
    %419 = vmax.xlane.f32.xlu0 %v418
    %v420 = vpop.xlane.xlu0 %419
    %v421 = vmax.f32 %v35, %v36
    %422 = vmax.xlane.f32.xlu0 %v421
    %v423 = vpop.xlane.xlu0 %422
    %v424 = vmax.f32 %v37, %v38
    %425 = vmax.xlane.f32.xlu0 %v424
    %v426 = vpop.xlane.xlu0 %425
    %v427 = vmax.f32 %v39, %v40
    %428 = vmax.xlane.f32.xlu0 %v427
    %v429 = vpop.xlane.xlu0 %428
    %v430 = vmax.f32 %v41, %v42
    %431 = vmax.xlane.f32.xlu0 %v430
    %v432 = vpop.xlane.xlu0 %431
    %v433 = vmax.f32 %v43, %v44
    %434 = vmax.xlane.f32.xlu0 %v433
    %v435 = vpop.xlane.xlu0 %434
    %v436 = vmax.f32 %v45, %v46
    %437 = vmax.xlane.f32.xlu0 %v436
    %v438 = vpop.xlane.xlu0 %437
    %v439 = vmax.f32 %v47, %v48
    %440 = vmax.xlane.f32.xlu0 %v439
    %v441 = vpop.xlane.xlu0 %440
    %v442 = vmax.f32 %v49, %v50
    %443 = vmax.xlane.f32.xlu0 %v442
    %v444 = vpop.xlane.xlu0 %443
    %v445 = vmax.f32 %v51, %v52
    %446 = vmax.xlane.f32.xlu0 %v445
    %v447 = vpop.xlane.xlu0 %446
    %v448 = vmax.f32 %v53, %v54
    %449 = vmax.xlane.f32.xlu0 %v448
    %v450 = vpop.xlane.xlu0 %449
    %v451 = vmax.f32 %v55, %v56
    %452 = vmax.xlane.f32.xlu0 %v451
    %v453 = vpop.xlane.xlu0 %452
    %v454 = vmax.f32 %v57, %v58
    %455 = vmax.xlane.f32.xlu0 %v454
    %v456 = vpop.xlane.xlu0 %455
    %v457 = vmax.f32 %v59, %v60
    %458 = vmax.xlane.f32.xlu0 %v457
    %v459 = vpop.xlane.xlu0 %458
    %v460 = vmax.f32 %v61, %v62
    %461 = vmax.xlane.f32.xlu0 %v460
    %v462 = vpop.xlane.xlu0 %461
    %v463 = vmax.f32 %v63, %v64
    %464 = vmax.xlane.f32.xlu0 %v463
    %v465 = vpop.xlane.xlu0 %464
    %v466 = vmax.f32 %v65, %v66
    %467 = vmax.xlane.f32.xlu0 %v466
    %v468 = vpop.xlane.xlu0 %467
    %v469 = vmax.f32 %v67, %v68
    %470 = vmax.xlane.f32.xlu0 %v469
    %v471 = vpop.xlane.xlu0 %470
    %v472 = vmax.f32 %v69, %v70
    %473 = vmax.xlane.f32.xlu0 %v472
    %v474 = vpop.xlane.xlu0 %473
    %v475 = vmax.f32 %v71, %v72
    %476 = vmax.xlane.f32.xlu0 %v475
    %v477 = vpop.xlane.xlu0 %476
    %v478 = vmax.f32 %v73, %v74
    %479 = vmax.xlane.f32.xlu0 %v478
    %v480 = vpop.xlane.xlu0 %479
    %v481 = vmax.f32 %v75, %v76
    %482 = vmax.xlane.f32.xlu0 %v481
    %v483 = vpop.xlane.xlu0 %482
    %v484 = vmax.f32 %v77, %v78
    %485 = vmax.xlane.f32.xlu0 %v484
    %v486 = vpop.xlane.xlu0 %485
    %v487 = vmax.f32 %v79, %v80
    %488 = vmax.xlane.f32.xlu0 %v487
    %v489 = vpop.xlane.xlu0 %488
    %v490 = vmax.f32 %v81, %v82
    %491 = vmax.xlane.f32.xlu0 %v490
    %v492 = vpop.xlane.xlu0 %491
    %v493 = vmax.f32 %v83, %v84
    %494 = vmax.xlane.f32.xlu0 %v493
    %v495 = vpop.xlane.xlu0 %494
    %v496 = vmax.f32 %v85, %v86
    %497 = vmax.xlane.f32.xlu0 %v496
    %v498 = vpop.xlane.xlu0 %497
    %v499 = vmax.f32 %v87, %v88
    %500 = vmax.xlane.f32.xlu0 %v499
    %v501 = vpop.xlane.xlu0 %500
    %v502 = vmax.f32 %v89, %v90
    %503 = vmax.xlane.f32.xlu0 %v502
    %v504 = vpop.xlane.xlu0 %503
    %v505 = vmax.f32 %v91, %v92
    %506 = vmax.xlane.f32.xlu0 %v505
    %v507 = vpop.xlane.xlu0 %506
    %v508 = vmax.f32 %v93, %v94
    %509 = vmax.xlane.f32.xlu0 %v508
    %v510 = vpop.xlane.xlu0 %509
    %v511 = vmax.f32 %v95, %v96
    %512 = vmax.xlane.f32.xlu0 %v511
    %v513 = vpop.xlane.xlu0 %512
    %v514 = vmax.f32 %v97, %v98
    %515 = vmax.xlane.f32.xlu0 %v514
    %v516 = vpop.xlane.xlu0 %515
    %v517 = vmax.f32 %v99, %v100
    %518 = vmax.xlane.f32.xlu0 %v517
    %v519 = vpop.xlane.xlu0 %518
    %v520 = vmax.f32 %v101, %v102
    %521 = vmax.xlane.f32.xlu0 %v520
    %v522 = vpop.xlane.xlu0 %521
    %v523 = vmax.f32 %v103, %v104
    %524 = vmax.xlane.f32.xlu0 %v523
    %v525 = vpop.xlane.xlu0 %524
    %v526 = vmax.f32 %v105, %v106
    %527 = vmax.xlane.f32.xlu0 %v526
    %v528 = vpop.xlane.xlu0 %527
    %v529 = vmax.f32 %v107, %v108
    %530 = vmax.xlane.f32.xlu0 %v529
    %v531 = vpop.xlane.xlu0 %530
    %v532 = vmax.f32 %v109, %v110
    %533 = vmax.xlane.f32.xlu0 %v532
    %v534 = vpop.xlane.xlu0 %533
    %v535 = vmax.f32 %v111, %v112
    %536 = vmax.xlane.f32.xlu0 %v535
    %v537 = vpop.xlane.xlu0 %536
    %v538 = vmax.f32 %v113, %v114
    %539 = vmax.xlane.f32.xlu0 %v538
    %v540 = vpop.xlane.xlu0 %539
    %v541 = vmax.f32 %v115, %v116
    %542 = vmax.xlane.f32.xlu0 %v541
    %v543 = vpop.xlane.xlu0 %542
    %v544 = vmax.f32 %v117, %v118
    %545 = vmax.xlane.f32.xlu0 %v544
    %v546 = vpop.xlane.xlu0 %545
    %v547 = vmax.f32 %v119, %v120
    %548 = vmax.xlane.f32.xlu0 %v547
    %v549 = vpop.xlane.xlu0 %548
    %v550 = vmax.f32 %v121, %v122
    %551 = vmax.xlane.f32.xlu0 %v550
    %v552 = vpop.xlane.xlu0 %551
    %v553 = vmax.f32 %v123, %v124
    %554 = vmax.xlane.f32.xlu0 %v553
    %v555 = vpop.xlane.xlu0 %554
    %v556 = vmax.f32 %v125, %v126
    %557 = vmax.xlane.f32.xlu0 %v556
    %v558 = vpop.xlane.xlu0 %557
    %v559 = vmax.f32 %v127, %v128
    %560 = vmax.xlane.f32.xlu0 %v559
    %v561 = vpop.xlane.xlu0 %560
    %v562 = vmax.f32 %v129, %v130
    %563 = vmax.xlane.f32.xlu0 %v562
    %v564 = vpop.xlane.xlu0 %563
    %v565 = vmax.f32 %v131, %v132
    %566 = vmax.xlane.f32.xlu0 %v565
    %v567 = vpop.xlane.xlu0 %566
    %v568 = vmax.f32 %v133, %v134
    %569 = vmax.xlane.f32.xlu0 %v568
    %v570 = vpop.xlane.xlu0 %569
    %v571 = vmax.f32 %v135, %v136
    %572 = vmax.xlane.f32.xlu0 %v571
    %v573 = vpop.xlane.xlu0 %572
    %v574 = vmax.f32 %v137, %v138
    %575 = vmax.xlane.f32.xlu0 %v574
    %v576 = vpop.xlane.xlu0 %575
    %v577 = vmax.f32 %v139, %v140
    %578 = vmax.xlane.f32.xlu0 %v577
    %v579 = vpop.xlane.xlu0 %578
    %v580 = vmax.f32 %v141, %v142
    %581 = vmax.xlane.f32.xlu0 %v580
    %v582 = vpop.xlane.xlu0 %581
    %v583 = vmax.f32 %v143, %v144
    %584 = vmax.xlane.f32.xlu0 %v583
    %v585 = vpop.xlane.xlu0 %584
    %v586 = vmax.f32 %v145, %v146
    %587 = vmax.xlane.f32.xlu0 %v586
    %v588 = vpop.xlane.xlu0 %587
    %v589 = vmax.f32 %v147, %v148
    %590 = vmax.xlane.f32.xlu0 %v589
    %v591 = vpop.xlane.xlu0 %590
    %v592 = vmax.f32 %v149, %v150
    %593 = vmax.xlane.f32.xlu0 %v592
    %v594 = vpop.xlane.xlu0 %593
    %v595 = vmax.f32 %v151, %v152
    %596 = vmax.xlane.f32.xlu0 %v595
    %v597 = vpop.xlane.xlu0 %596
    %v598 = vmax.f32 %v153, %v154
    %599 = vmax.xlane.f32.xlu0 %v598
    %v600 = vpop.xlane.xlu0 %599
    %v601 = vmax.f32 %v155, %v156
    %602 = vmax.xlane.f32.xlu0 %v601
    %v603 = vpop.xlane.xlu0 %602
    %v604 = vmax.f32 %v157, %v158
    %605 = vmax.xlane.f32.xlu0 %v604
    %v606 = vpop.xlane.xlu0 %605
    %v607 = vld [vmem:[%s1] sm:$0xf]
    %v608 = vld [vmem:[%s2] sm:$0xff]
    %v609 = vld [vmem:[%s2 + $0x8] sm:$0xff]
    %v610 = vld [vmem:[%s2 + $0x10] sm:$0xff]
    %v611 = vld [vmem:[%s2 + $0x18] sm:$0xff]
    %v612 = vld [vmem:[%s2 + $0x20] sm:$0xff]
    %v613 = vld [vmem:[%s2 + $0x28] sm:$0xff]
    %v614 = vld [vmem:[%s2 + $0x30] sm:$0xff]
    %v615 = vld [vmem:[%s2 + $0x38] sm:$0xff]
    %v680 = vlaneseq
    %v681 = vand.u32 %v680, 127
    %v682 = vperm.slane %v351, %v681
    %v683 = vadd.s32 %v681, 4294967288
    %v684 = vperm.slane %v352, %v683
    %vm685 = vcmask 130112
    %v686 = vsel %vm685, %v684, %v682
    %v687 = vadd.s32 %v681, 4294967280
    %v688 = vperm.slane %v353, %v687
    %vm689 = vcmask 195712
    %v690 = vsel %vm689, %v688, %v686
    %v691 = vadd.s32 %v681, 4294967272
    %v692 = vperm.slane %v354, %v691
    %vm693 = vcmask 261312
    %v694 = vsel %vm693, %v692, %v690
    %v695 = vadd.s32 %v681, 4294967264
    %v696 = vperm.slane %v355, %v695
    %vm697 = vcmask 326912
    %v698 = vsel %vm697, %v696, %v694
    %v699 = vadd.s32 %v681, 4294967256
    %v700 = vperm.slane %v356, %v699
    %vm701 = vcmask 392512
    %v702 = vsel %vm701, %v700, %v698
    %v703 = vadd.s32 %v681, 4294967248
    %v704 = vperm.slane %v357, %v703
    %vm705 = vcmask 458112
    %v706 = vsel %vm705, %v704, %v702
    %v707 = vadd.s32 %v681, 4294967240
    %v708 = vperm.slane %v358, %v707
    %vm709 = vcmask 523712
    %v710 = vsel %vm709, %v708, %v706
    %v711 = vperm.slane %v359, %v681
    %v712 = vperm.slane %v360, %v683
    %v713 = vsel %vm685, %v712, %v711
    %v714 = vperm.slane %v361, %v687
    %v715 = vsel %vm689, %v714, %v713
    %v716 = vperm.slane %v362, %v691
    %v717 = vsel %vm693, %v716, %v715
    %v718 = vperm.slane %v363, %v695
    %v719 = vsel %vm697, %v718, %v717
    %v720 = vperm.slane %v364, %v699
    %v721 = vsel %vm701, %v720, %v719
    %v722 = vperm.slane %v365, %v703
    %v723 = vsel %vm705, %v722, %v721
    %v724 = vperm.slane %v366, %v707
    %v725 = vsel %vm709, %v724, %v723
    %v726 = vperm.slane %v367, %v681
    %v727 = vperm.slane %v368, %v683
    %v728 = vsel %vm685, %v727, %v726
    %v729 = vperm.slane %v369, %v687
    %v730 = vsel %vm689, %v729, %v728
    %v731 = vperm.slane %v370, %v691
    %v732 = vsel %vm693, %v731, %v730
    %v733 = vperm.slane %v371, %v695
    %v734 = vsel %vm697, %v733, %v732
    %v735 = vperm.slane %v372, %v699
    %v736 = vsel %vm701, %v735, %v734
    %v737 = vperm.slane %v373, %v703
    %v738 = vsel %vm705, %v737, %v736
    %v739 = vperm.slane %v374, %v707
    %v740 = vsel %vm709, %v739, %v738
    %v741 = vperm.slane %v375, %v681
    %v742 = vperm.slane %v376, %v683
    %v743 = vsel %vm685, %v742, %v741
    %v744 = vperm.slane %v377, %v687
    %v745 = vsel %vm689, %v744, %v743
    %v746 = vperm.slane %v378, %v691
    %v747 = vsel %vm693, %v746, %v745
    %v748 = vperm.slane %v379, %v695
    %v749 = vsel %vm697, %v748, %v747
    %v750 = vperm.slane %v380, %v699
    %v751 = vsel %vm701, %v750, %v749
    %v752 = vperm.slane %v381, %v703
    %v753 = vsel %vm705, %v752, %v751
    %v754 = vperm.slane %v382, %v707
    %v755 = vsel %vm709, %v754, %v753
    %v756 = vperm.slane %v383, %v681
    %v757 = vperm.slane %v384, %v683
    %v758 = vsel %vm685, %v757, %v756
    %v759 = vperm.slane %v385, %v687
    %v760 = vsel %vm689, %v759, %v758
    %v761 = vperm.slane %v386, %v691
    %v762 = vsel %vm693, %v761, %v760
    %v763 = vperm.slane %v387, %v695
    %v764 = vsel %vm697, %v763, %v762
    %v765 = vperm.slane %v388, %v699
    %v766 = vsel %vm701, %v765, %v764
    %v767 = vperm.slane %v389, %v703
    %v768 = vsel %vm705, %v767, %v766
    %v769 = vperm.slane %v390, %v707
    %v770 = vsel %vm709, %v769, %v768
    %v771 = vperm.slane %v391, %v681
    %v772 = vperm.slane %v392, %v683
    %v773 = vsel %vm685, %v772, %v771
    %v774 = vperm.slane %v393, %v687
    %v775 = vsel %vm689, %v774, %v773
    %v776 = vperm.slane %v394, %v691
    %v777 = vsel %vm693, %v776, %v775
    %v778 = vperm.slane %v395, %v695
    %v779 = vsel %vm697, %v778, %v777
    %v780 = vperm.slane %v396, %v699
    %v781 = vsel %vm701, %v780, %v779
    %v782 = vperm.slane %v397, %v703
    %v783 = vsel %vm705, %v782, %v781
    %v784 = vperm.slane %v398, %v707
    %v785 = vsel %vm709, %v784, %v783
    %v786 = vperm.slane %v399, %v681
    %v787 = vperm.slane %v400, %v683
    %v788 = vsel %vm685, %v787, %v786
    %v789 = vperm.slane %v401, %v687
    %v790 = vsel %vm689, %v789, %v788
    %v791 = vperm.slane %v402, %v691
    %v792 = vsel %vm693, %v791, %v790
    %v793 = vperm.slane %v403, %v695
    %v794 = vsel %vm697, %v793, %v792
    %v795 = vperm.slane %v404, %v699
    %v796 = vsel %vm701, %v795, %v794
    %v797 = vperm.slane %v405, %v703
    %v798 = vsel %vm705, %v797, %v796
    %v799 = vperm.slane %v406, %v707
    %v800 = vsel %vm709, %v799, %v798
    %v801 = vperm.slane %v407, %v681
    %v802 = vperm.slane %v408, %v683
    %v803 = vsel %vm685, %v802, %v801
    %v804 = vperm.slane %v409, %v687
    %v805 = vsel %vm689, %v804, %v803
    %v806 = vperm.slane %v410, %v691
    %v807 = vsel %vm693, %v806, %v805
    %v808 = vperm.slane %v411, %v695
    %v809 = vsel %vm697, %v808, %v807
    %v810 = vperm.slane %v412, %v699
    %v811 = vsel %vm701, %v810, %v809
    %v812 = vperm.slane %v413, %v703
    %v813 = vsel %vm705, %v812, %v811
    %v814 = vperm.slane %v414, %v707
    %v815 = vsel %vm709, %v814, %v813
    %vm816 = vcmask 1041409
    %v817 = vsel %vm816, %v725, %v710
    %vm818 = vcmask 1042434
    %v819 = vsel %vm818, %v740, %v817
    %vm820 = vcmask 1043459
    %v821 = vsel %vm820, %v755, %v819
    %vm822 = vcmask 1044484
    %v823 = vsel %vm822, %v770, %v821
    %vm824 = vcmask 1045509
    %v825 = vsel %vm824, %v785, %v823
    %vm826 = vcmask 1046534
    %v827 = vsel %vm826, %v800, %v825
    %vm828 = vcmask 1047559
    %v829 = vsel %vm828, %v815, %v827
    %vm830 = vcmask 523264
    %v831 = vsel %vm830, %v829, 0
    %v834 = vsel %vm830, %v607, 0
    %836 = vmatpush.xpose.msra.mxu0 0.0
    %837 = vmatpush.xpose.msra.mxu0 0.0
    %838 = vmatpush.xpose.msra.mxu0 0.0
    %839 = vmatpush.xpose.msra.mxu0 0.0
    %840 = vmatpush.xpose.msra.mxu0 0.0
    %841 = vmatpush.xpose.msra.mxu0 0.0
    %842 = vmatpush.xpose.msra.mxu0 0.0
    %843 = vmatpush.xpose.msra.mxu0 0.0
    %844 = vmatpush.xpose.msra.mxu0 0.0
    %845 = vmatpush.xpose.msra.mxu0 0.0
    %846 = vmatpush.xpose.msra.mxu0 0.0
    %847 = vmatpush.xpose.msra.mxu0 0.0
    %848 = vmatpush.xpose.msra.mxu0 0.0
    %849 = vmatpush.xpose.msra.mxu0 0.0
    %850 = vmatpush.xpose.msra.mxu0 0.0
    %851 = vmatpush.xpose.msra.mxu0 %v834
    %852 = vmatmul.f32.gmra.mxu0 %v831
    %v853 = vpop.f32.mrf.mxu0
    %v854 = vadd.f32 0.0, %v853
    %855 = vdwg.mxu0
    %v856 = vmax.f32 %v854, 0.0
    %v921 = vperm.slane %v417, %v681
    %v922 = vperm.slane %v420, %v683
    %v923 = vsel %vm685, %v922, %v921
    %v924 = vperm.slane %v423, %v687
    %v925 = vsel %vm689, %v924, %v923
    %v926 = vperm.slane %v426, %v691
    %v927 = vsel %vm693, %v926, %v925
    %v928 = vperm.slane %v429, %v695
    %v929 = vsel %vm697, %v928, %v927
    %v930 = vperm.slane %v432, %v699
    %v931 = vsel %vm701, %v930, %v929
    %v932 = vperm.slane %v435, %v703
    %v933 = vsel %vm705, %v932, %v931
    %v934 = vperm.slane %v438, %v707
    %v935 = vsel %vm709, %v934, %v933
    %v936 = vperm.slane %v441, %v681
    %v937 = vperm.slane %v444, %v683
    %v938 = vsel %vm685, %v937, %v936
    %v939 = vperm.slane %v447, %v687
    %v940 = vsel %vm689, %v939, %v938
    %v941 = vperm.slane %v450, %v691
    %v942 = vsel %vm693, %v941, %v940
    %v943 = vperm.slane %v453, %v695
    %v944 = vsel %vm697, %v943, %v942
    %v945 = vperm.slane %v456, %v699
    %v946 = vsel %vm701, %v945, %v944
    %v947 = vperm.slane %v459, %v703
    %v948 = vsel %vm705, %v947, %v946
    %v949 = vperm.slane %v462, %v707
    %v950 = vsel %vm709, %v949, %v948
    %v951 = vperm.slane %v465, %v681
    %v952 = vperm.slane %v468, %v683
    %v953 = vsel %vm685, %v952, %v951
    %v954 = vperm.slane %v471, %v687
    %v955 = vsel %vm689, %v954, %v953
    %v956 = vperm.slane %v474, %v691
    %v957 = vsel %vm693, %v956, %v955
    %v958 = vperm.slane %v477, %v695
    %v959 = vsel %vm697, %v958, %v957
    %v960 = vperm.slane %v480, %v699
    %v961 = vsel %vm701, %v960, %v959
    %v962 = vperm.slane %v483, %v703
    %v963 = vsel %vm705, %v962, %v961
    %v964 = vperm.slane %v486, %v707
    %v965 = vsel %vm709, %v964, %v963
    %v966 = vperm.slane %v489, %v681
    %v967 = vperm.slane %v492, %v683
    %v968 = vsel %vm685, %v967, %v966
    %v969 = vperm.slane %v495, %v687
    %v970 = vsel %vm689, %v969, %v968
    %v971 = vperm.slane %v498, %v691
    %v972 = vsel %vm693, %v971, %v970
    %v973 = vperm.slane %v501, %v695
    %v974 = vsel %vm697, %v973, %v972
    %v975 = vperm.slane %v504, %v699
    %v976 = vsel %vm701, %v975, %v974
    %v977 = vperm.slane %v507, %v703
    %v978 = vsel %vm705, %v977, %v976
    %v979 = vperm.slane %v510, %v707
    %v980 = vsel %vm709, %v979, %v978
    %v981 = vperm.slane %v513, %v681
    %v982 = vperm.slane %v516, %v683
    %v983 = vsel %vm685, %v982, %v981
    %v984 = vperm.slane %v519, %v687
    %v985 = vsel %vm689, %v984, %v983
    %v986 = vperm.slane %v522, %v691
    %v987 = vsel %vm693, %v986, %v985
    %v988 = vperm.slane %v525, %v695
    %v989 = vsel %vm697, %v988, %v987
    %v990 = vperm.slane %v528, %v699
    %v991 = vsel %vm701, %v990, %v989
    %v992 = vperm.slane %v531, %v703
    %v993 = vsel %vm705, %v992, %v991
    %v994 = vperm.slane %v534, %v707
    %v995 = vsel %vm709, %v994, %v993
    %v996 = vperm.slane %v537, %v681
    %v997 = vperm.slane %v540, %v683
    %v998 = vsel %vm685, %v997, %v996
    %v999 = vperm.slane %v543, %v687
    %v1000 = vsel %vm689, %v999, %v998
    %v1001 = vperm.slane %v546, %v691
    %v1002 = vsel %vm693, %v1001, %v1000
    %v1003 = vperm.slane %v549, %v695
    %v1004 = vsel %vm697, %v1003, %v1002
    %v1005 = vperm.slane %v552, %v699
    %v1006 = vsel %vm701, %v1005, %v1004
    %v1007 = vperm.slane %v555, %v703
    %v1008 = vsel %vm705, %v1007, %v1006
    %v1009 = vperm.slane %v558, %v707
    %v1010 = vsel %vm709, %v1009, %v1008
    %v1011 = vperm.slane %v561, %v681
    %v1012 = vperm.slane %v564, %v683
    %v1013 = vsel %vm685, %v1012, %v1011
    %v1014 = vperm.slane %v567, %v687
    %v1015 = vsel %vm689, %v1014, %v1013
    %v1016 = vperm.slane %v570, %v691
    %v1017 = vsel %vm693, %v1016, %v1015
    %v1018 = vperm.slane %v573, %v695
    %v1019 = vsel %vm697, %v1018, %v1017
    %v1020 = vperm.slane %v576, %v699
    %v1021 = vsel %vm701, %v1020, %v1019
    %v1022 = vperm.slane %v579, %v703
    %v1023 = vsel %vm705, %v1022, %v1021
    %v1024 = vperm.slane %v582, %v707
    %v1025 = vsel %vm709, %v1024, %v1023
    %v1026 = vperm.slane %v585, %v681
    %v1027 = vperm.slane %v588, %v683
    %v1028 = vsel %vm685, %v1027, %v1026
    %v1029 = vperm.slane %v591, %v687
    %v1030 = vsel %vm689, %v1029, %v1028
    %v1031 = vperm.slane %v594, %v691
    %v1032 = vsel %vm693, %v1031, %v1030
    %v1033 = vperm.slane %v597, %v695
    %v1034 = vsel %vm697, %v1033, %v1032
    %v1035 = vperm.slane %v600, %v699
    %v1036 = vsel %vm701, %v1035, %v1034
    %v1037 = vperm.slane %v603, %v703
    %v1038 = vsel %vm705, %v1037, %v1036
    %v1039 = vperm.slane %v606, %v707
    %v1040 = vsel %vm709, %v1039, %v1038
    %v1041 = vsel %vm816, %v950, %v935
    %v1042 = vsel %vm818, %v965, %v1041
    %v1043 = vsel %vm820, %v980, %v1042
    %v1044 = vsel %vm822, %v995, %v1043
    %v1045 = vsel %vm824, %v1010, %v1044
    %v1046 = vsel %vm826, %v1025, %v1045
    %v1047 = vsel %vm828, %v1040, %v1046
    %v1048 = vsel %vm830, %v1047, 0
    %1050 = vmatpush.xpose.msra.mxu0 0.0
    %1051 = vmatpush.xpose.msra.mxu0 0.0
    %1052 = vmatpush.xpose.msra.mxu0 0.0
    %1053 = vmatpush.xpose.msra.mxu0 0.0
    %1054 = vmatpush.xpose.msra.mxu0 0.0
    %1055 = vmatpush.xpose.msra.mxu0 0.0
    %1056 = vmatpush.xpose.msra.mxu0 0.0
    %1057 = vmatpush.xpose.msra.mxu0 0.0
    %1058 = vmatpush.xpose.msra.mxu0 0.0
    %1059 = vmatpush.xpose.msra.mxu0 0.0
    %1060 = vmatpush.xpose.msra.mxu0 0.0
    %1061 = vmatpush.xpose.msra.mxu0 0.0
    %1062 = vmatpush.xpose.msra.mxu0 0.0
    %1063 = vmatpush.xpose.msra.mxu0 0.0
    %1064 = vmatpush.xpose.msra.mxu0 0.0
    %1065 = vmatpush.xpose.msra.mxu0 %v834
    %1066 = vmatmul.f32.gmra.mxu0 %v1048
    %v1067 = vpop.f32.mrf.mxu0
    %v1068 = vadd.f32 0.0, %v1067
    %1069 = vdwg.mxu0
    %v1070 = vmax.f32 %v1068, 0.0
    %vm1071 = vcmask 31744
    %v1073 = vsel %vm1071, %v1070, 0
    %v1076 = vsel %vm1071, %v608, 0
    %v1079 = vsel %vm1071, %v609, 0
    %v1082 = vsel %vm1071, %v610, 0
    %v1085 = vsel %vm1071, %v611, 0
    %v1088 = vsel %vm1071, %v612, 0
    %v1091 = vsel %vm1071, %v613, 0
    %v1094 = vsel %vm1071, %v614, 0
    %v1097 = vsel %vm1071, %v615, 0
    %1099 = vmatpush.xpose.msra.mxu0 0.0
    %1100 = vmatpush.xpose.msra.mxu0 0.0
    %1101 = vmatpush.xpose.msra.mxu0 0.0
    %1102 = vmatpush.xpose.msra.mxu0 0.0
    %1103 = vmatpush.xpose.msra.mxu0 0.0
    %1104 = vmatpush.xpose.msra.mxu0 0.0
    %1105 = vmatpush.xpose.msra.mxu0 0.0
    %1106 = vmatpush.xpose.msra.mxu0 0.0
    %1107 = vmatpush.xpose.msra.mxu0 %v1097
    %1108 = vmatpush.xpose.msra.mxu0 %v1094
    %1109 = vmatpush.xpose.msra.mxu0 %v1091
    %1110 = vmatpush.xpose.msra.mxu0 %v1088
    %1111 = vmatpush.xpose.msra.mxu0 %v1085
    %1112 = vmatpush.xpose.msra.mxu0 %v1082
    %1113 = vmatpush.xpose.msra.mxu0 %v1079
    %1114 = vmatpush.xpose.msra.mxu0 %v1076
    %1115 = vmatmul.f32.gmra.mxu0 %v1073
    %v1116 = vpop.f32.mrf.mxu0
    %v1117 = vadd.f32 0.0, %v1116
    %1118 = vdwg.mxu0
    %v1120 = vsel %vm1071, %v856, 0
    %1122 = vmatpush.xpose.msra.mxu0 0.0
    %1123 = vmatpush.xpose.msra.mxu0 0.0
    %1124 = vmatpush.xpose.msra.mxu0 0.0
    %1125 = vmatpush.xpose.msra.mxu0 0.0
    %1126 = vmatpush.xpose.msra.mxu0 0.0
    %1127 = vmatpush.xpose.msra.mxu0 0.0
    %1128 = vmatpush.xpose.msra.mxu0 0.0
    %1129 = vmatpush.xpose.msra.mxu0 0.0
    %1130 = vmatpush.xpose.msra.mxu0 %v1097
    %1131 = vmatpush.xpose.msra.mxu0 %v1094
    %1132 = vmatpush.xpose.msra.mxu0 %v1091
    %1133 = vmatpush.xpose.msra.mxu0 %v1088
    %1134 = vmatpush.xpose.msra.mxu0 %v1085
    %1135 = vmatpush.xpose.msra.mxu0 %v1082
    %1136 = vmatpush.xpose.msra.mxu0 %v1079
    %1137 = vmatpush.xpose.msra.mxu0 %v1076
    %1138 = vmatmul.f32.gmra.mxu0 %v1120
    %v1139 = vpop.f32.mrf.mxu0
    %v1140 = vadd.f32 %v1117, %v1139
    %1141 = vdwg.mxu0
    %v1142 = vxor.u32 %v1140, 2147483648
    %v1143 = vmul.f32 %v1142, 1.442695
    %v1144 = vpow.pop %v1143
    %v1145 = vadd.f32 %v1144, 1.0
    %v1146 = vrcp.pop %v1145
    %v1147 = vmul.f32 %v1145, %v1146
    %v1148 = vsub.f32 1.0, %v1147
    %v1149 = vmul.f32 %v1146, %v1148
    %v1150 = vadd.f32 %v1146, %v1149
    %vm1151 = vweird.f32 %v1145
    %vm1152 = vweird.f32 %v1146
    %vm1153 = vmor %vm1151, %vm1152
    %v1154 = vsel %vm1153, %v1146, %v1150
    %v1155 = vand.u32 2147483647, %v1145
    %vm1156 = vcmp.eq.f32.partialorder %v1155, 8.507059e+37
    %v1157 = vand.u32 %v1145, 2147483648
    %v1158 = vor.u32 1.1754944e-38, %v1157
    %v1159 = vsel %vm1156, %v1158, %v1154
    %v1160 = vmul.f32 1.0, %v1159
    %v1161 = vperm.slane %v1160, 0
    %v1162 = vlaneseq
    %v1163 = vshrl.u32 %v1162, 7
    %1165 = vset.pattern.permute.xlu0 %v1163
    %1166 = vperm.xlu0 %1165, %v1161
    %v1167 = vpop.permute.xlu0 %1166
    %v1168 = vlaneseq
    %v1169 = vshrl.u32 %v1168, 7
    %v1170 = vadd.s32 %v1169, 8
    %1171 = vset.pattern.permute.xlu0 %v1170
    %1172 = vperm.xlu0 %1171, %v1161
    %v1173 = vpop.permute.xlu0 %1172
    %v1174 = vlaneseq
    %v1175 = vshrl.u32 %v1174, 7
    %v1176 = vadd.s32 %v1175, 16
    %1177 = vset.pattern.permute.xlu0 %v1176
    %1178 = vperm.xlu0 %1177, %v1161
    %v1179 = vpop.permute.xlu0 %1178
    %v1180 = vlaneseq
    %v1181 = vshrl.u32 %v1180, 7
    %v1182 = vadd.s32 %v1181, 24
    %1183 = vset.pattern.permute.xlu0 %v1182
    %1184 = vperm.xlu0 %1183, %v1161
    %v1185 = vpop.permute.xlu0 %1184
    %v1186 = vlaneseq
    %v1187 = vshrl.u32 %v1186, 7
    %v1188 = vadd.s32 %v1187, 32
    %1189 = vset.pattern.permute.xlu0 %v1188
    %1190 = vperm.xlu0 %1189, %v1161
    %v1191 = vpop.permute.xlu0 %1190
    %v1192 = vlaneseq
    %v1193 = vshrl.u32 %v1192, 7
    %v1194 = vadd.s32 %v1193, 40
    %1195 = vset.pattern.permute.xlu0 %v1194
    %1196 = vperm.xlu0 %1195, %v1161
    %v1197 = vpop.permute.xlu0 %1196
    %v1198 = vlaneseq
    %v1199 = vshrl.u32 %v1198, 7
    %v1200 = vadd.s32 %v1199, 48
    %1201 = vset.pattern.permute.xlu0 %v1200
    %1202 = vperm.xlu0 %1201, %v1161
    %v1203 = vpop.permute.xlu0 %1202
    %v1204 = vlaneseq
    %v1205 = vshrl.u32 %v1204, 7
    %v1206 = vadd.s32 %v1205, 56
    %1207 = vset.pattern.permute.xlu0 %v1206
    %1208 = vperm.xlu0 %1207, %v1161
    %v1209 = vpop.permute.xlu0 %1208
    %v1210 = vperm.slane %v1160, 1
    %v1211 = vlaneseq
    %v1212 = vshrl.u32 %v1211, 7
    %1214 = vset.pattern.permute.xlu0 %v1212
    %1215 = vperm.xlu0 %1214, %v1210
    %v1216 = vpop.permute.xlu0 %1215
    %v1217 = vlaneseq
    %v1218 = vshrl.u32 %v1217, 7
    %v1219 = vadd.s32 %v1218, 8
    %1220 = vset.pattern.permute.xlu0 %v1219
    %1221 = vperm.xlu0 %1220, %v1210
    %v1222 = vpop.permute.xlu0 %1221
    %v1223 = vlaneseq
    %v1224 = vshrl.u32 %v1223, 7
    %v1225 = vadd.s32 %v1224, 16
    %1226 = vset.pattern.permute.xlu0 %v1225
    %1227 = vperm.xlu0 %1226, %v1210
    %v1228 = vpop.permute.xlu0 %1227
    %v1229 = vlaneseq
    %v1230 = vshrl.u32 %v1229, 7
    %v1231 = vadd.s32 %v1230, 24
    %1232 = vset.pattern.permute.xlu0 %v1231
    %1233 = vperm.xlu0 %1232, %v1210
    %v1234 = vpop.permute.xlu0 %1233
    %v1235 = vlaneseq
    %v1236 = vshrl.u32 %v1235, 7
    %v1237 = vadd.s32 %v1236, 32
    %1238 = vset.pattern.permute.xlu0 %v1237
    %1239 = vperm.xlu0 %1238, %v1210
    %v1240 = vpop.permute.xlu0 %1239
    %v1241 = vlaneseq
    %v1242 = vshrl.u32 %v1241, 7
    %v1243 = vadd.s32 %v1242, 40
    %1244 = vset.pattern.permute.xlu0 %v1243
    %1245 = vperm.xlu0 %1244, %v1210
    %v1246 = vpop.permute.xlu0 %1245
    %v1247 = vlaneseq
    %v1248 = vshrl.u32 %v1247, 7
    %v1249 = vadd.s32 %v1248, 48
    %1250 = vset.pattern.permute.xlu0 %v1249
    %1251 = vperm.xlu0 %1250, %v1210
    %v1252 = vpop.permute.xlu0 %1251
    %v1253 = vlaneseq
    %v1254 = vshrl.u32 %v1253, 7
    %v1255 = vadd.s32 %v1254, 56
    %1256 = vset.pattern.permute.xlu0 %v1255
    %1257 = vperm.xlu0 %1256, %v1210
    %v1258 = vpop.permute.xlu0 %1257
    %v1259 = vperm.slane %v1160, 2
    %v1260 = vlaneseq
    %v1261 = vshrl.u32 %v1260, 7
    %1263 = vset.pattern.permute.xlu0 %v1261
    %1264 = vperm.xlu0 %1263, %v1259
    %v1265 = vpop.permute.xlu0 %1264
    %v1266 = vlaneseq
    %v1267 = vshrl.u32 %v1266, 7
    %v1268 = vadd.s32 %v1267, 8
    %1269 = vset.pattern.permute.xlu0 %v1268
    %1270 = vperm.xlu0 %1269, %v1259
    %v1271 = vpop.permute.xlu0 %1270
    %v1272 = vlaneseq
    %v1273 = vshrl.u32 %v1272, 7
    %v1274 = vadd.s32 %v1273, 16
    %1275 = vset.pattern.permute.xlu0 %v1274
    %1276 = vperm.xlu0 %1275, %v1259
    %v1277 = vpop.permute.xlu0 %1276
    %v1278 = vlaneseq
    %v1279 = vshrl.u32 %v1278, 7
    %v1280 = vadd.s32 %v1279, 24
    %1281 = vset.pattern.permute.xlu0 %v1280
    %1282 = vperm.xlu0 %1281, %v1259
    %v1283 = vpop.permute.xlu0 %1282
    %v1284 = vlaneseq
    %v1285 = vshrl.u32 %v1284, 7
    %v1286 = vadd.s32 %v1285, 32
    %1287 = vset.pattern.permute.xlu0 %v1286
    %1288 = vperm.xlu0 %1287, %v1259
    %v1289 = vpop.permute.xlu0 %1288
    %v1290 = vlaneseq
    %v1291 = vshrl.u32 %v1290, 7
    %v1292 = vadd.s32 %v1291, 40
    %1293 = vset.pattern.permute.xlu0 %v1292
    %1294 = vperm.xlu0 %1293, %v1259
    %v1295 = vpop.permute.xlu0 %1294
    %v1296 = vlaneseq
    %v1297 = vshrl.u32 %v1296, 7
    %v1298 = vadd.s32 %v1297, 48
    %1299 = vset.pattern.permute.xlu0 %v1298
    %1300 = vperm.xlu0 %1299, %v1259
    %v1301 = vpop.permute.xlu0 %1300
    %v1302 = vlaneseq
    %v1303 = vshrl.u32 %v1302, 7
    %v1304 = vadd.s32 %v1303, 56
    %1305 = vset.pattern.permute.xlu0 %v1304
    %1306 = vperm.xlu0 %1305, %v1259
    %v1307 = vpop.permute.xlu0 %1306
    %v1308 = vperm.slane %v1160, 3
    %v1309 = vlaneseq
    %v1310 = vshrl.u32 %v1309, 7
    %1312 = vset.pattern.permute.xlu0 %v1310
    %1313 = vperm.xlu0 %1312, %v1308
    %v1314 = vpop.permute.xlu0 %1313
    %v1315 = vlaneseq
    %v1316 = vshrl.u32 %v1315, 7
    %v1317 = vadd.s32 %v1316, 8
    %1318 = vset.pattern.permute.xlu0 %v1317
    %1319 = vperm.xlu0 %1318, %v1308
    %v1320 = vpop.permute.xlu0 %1319
    %v1321 = vlaneseq
    %v1322 = vshrl.u32 %v1321, 7
    %v1323 = vadd.s32 %v1322, 16
    %1324 = vset.pattern.permute.xlu0 %v1323
    %1325 = vperm.xlu0 %1324, %v1308
    %v1326 = vpop.permute.xlu0 %1325
    %v1327 = vlaneseq
    %v1328 = vshrl.u32 %v1327, 7
    %v1329 = vadd.s32 %v1328, 24
    %1330 = vset.pattern.permute.xlu0 %v1329
    %1331 = vperm.xlu0 %1330, %v1308
    %v1332 = vpop.permute.xlu0 %1331
    %v1333 = vlaneseq
    %v1334 = vshrl.u32 %v1333, 7
    %v1335 = vadd.s32 %v1334, 32
    %1336 = vset.pattern.permute.xlu0 %v1335
    %1337 = vperm.xlu0 %1336, %v1308
    %v1338 = vpop.permute.xlu0 %1337
    %v1339 = vlaneseq
    %v1340 = vshrl.u32 %v1339, 7
    %v1341 = vadd.s32 %v1340, 40
    %1342 = vset.pattern.permute.xlu0 %v1341
    %1343 = vperm.xlu0 %1342, %v1308
    %v1344 = vpop.permute.xlu0 %1343
    %v1345 = vlaneseq
    %v1346 = vshrl.u32 %v1345, 7
    %v1347 = vadd.s32 %v1346, 48
    %1348 = vset.pattern.permute.xlu0 %v1347
    %1349 = vperm.xlu0 %1348, %v1308
    %v1350 = vpop.permute.xlu0 %1349
    %v1351 = vlaneseq
    %v1352 = vshrl.u32 %v1351, 7
    %v1353 = vadd.s32 %v1352, 56
    %1354 = vset.pattern.permute.xlu0 %v1353
    %1355 = vperm.xlu0 %1354, %v1308
    %v1356 = vpop.permute.xlu0 %1355
    %v1357 = vperm.slane %v1160, 4
    %v1358 = vlaneseq
    %v1359 = vshrl.u32 %v1358, 7
    %1361 = vset.pattern.permute.xlu0 %v1359
    %1362 = vperm.xlu0 %1361, %v1357
    %v1363 = vpop.permute.xlu0 %1362
    %v1364 = vlaneseq
    %v1365 = vshrl.u32 %v1364, 7
    %v1366 = vadd.s32 %v1365, 8
    %1367 = vset.pattern.permute.xlu0 %v1366
    %1368 = vperm.xlu0 %1367, %v1357
    %v1369 = vpop.permute.xlu0 %1368
    %v1370 = vlaneseq
    %v1371 = vshrl.u32 %v1370, 7
    %v1372 = vadd.s32 %v1371, 16
    %1373 = vset.pattern.permute.xlu0 %v1372
    %1374 = vperm.xlu0 %1373, %v1357
    %v1375 = vpop.permute.xlu0 %1374
    %v1376 = vlaneseq
    %v1377 = vshrl.u32 %v1376, 7
    %v1378 = vadd.s32 %v1377, 24
    %1379 = vset.pattern.permute.xlu0 %v1378
    %1380 = vperm.xlu0 %1379, %v1357
    %v1381 = vpop.permute.xlu0 %1380
    %v1382 = vlaneseq
    %v1383 = vshrl.u32 %v1382, 7
    %v1384 = vadd.s32 %v1383, 32
    %1385 = vset.pattern.permute.xlu0 %v1384
    %1386 = vperm.xlu0 %1385, %v1357
    %v1387 = vpop.permute.xlu0 %1386
    %v1388 = vlaneseq
    %v1389 = vshrl.u32 %v1388, 7
    %v1390 = vadd.s32 %v1389, 40
    %1391 = vset.pattern.permute.xlu0 %v1390
    %1392 = vperm.xlu0 %1391, %v1357
    %v1393 = vpop.permute.xlu0 %1392
    %v1394 = vlaneseq
    %v1395 = vshrl.u32 %v1394, 7
    %v1396 = vadd.s32 %v1395, 48
    %1397 = vset.pattern.permute.xlu0 %v1396
    %1398 = vperm.xlu0 %1397, %v1357
    %v1399 = vpop.permute.xlu0 %1398
    %v1400 = vlaneseq
    %v1401 = vshrl.u32 %v1400, 7
    %v1402 = vadd.s32 %v1401, 56
    %1403 = vset.pattern.permute.xlu0 %v1402
    %1404 = vperm.xlu0 %1403, %v1357
    %v1405 = vpop.permute.xlu0 %1404
    %v1406 = vperm.slane %v1160, 5
    %v1407 = vlaneseq
    %v1408 = vshrl.u32 %v1407, 7
    %1410 = vset.pattern.permute.xlu0 %v1408
    %1411 = vperm.xlu0 %1410, %v1406
    %v1412 = vpop.permute.xlu0 %1411
    %v1413 = vlaneseq
    %v1414 = vshrl.u32 %v1413, 7
    %v1415 = vadd.s32 %v1414, 8
    %1416 = vset.pattern.permute.xlu0 %v1415
    %1417 = vperm.xlu0 %1416, %v1406
    %v1418 = vpop.permute.xlu0 %1417
    %v1419 = vlaneseq
    %v1420 = vshrl.u32 %v1419, 7
    %v1421 = vadd.s32 %v1420, 16
    %1422 = vset.pattern.permute.xlu0 %v1421
    %1423 = vperm.xlu0 %1422, %v1406
    %v1424 = vpop.permute.xlu0 %1423
    %v1425 = vlaneseq
    %v1426 = vshrl.u32 %v1425, 7
    %v1427 = vadd.s32 %v1426, 24
    %1428 = vset.pattern.permute.xlu0 %v1427
    %1429 = vperm.xlu0 %1428, %v1406
    %v1430 = vpop.permute.xlu0 %1429
    %v1431 = vlaneseq
    %v1432 = vshrl.u32 %v1431, 7
    %v1433 = vadd.s32 %v1432, 32
    %1434 = vset.pattern.permute.xlu0 %v1433
    %1435 = vperm.xlu0 %1434, %v1406
    %v1436 = vpop.permute.xlu0 %1435
    %v1437 = vlaneseq
    %v1438 = vshrl.u32 %v1437, 7
    %v1439 = vadd.s32 %v1438, 40
    %1440 = vset.pattern.permute.xlu0 %v1439
    %1441 = vperm.xlu0 %1440, %v1406
    %v1442 = vpop.permute.xlu0 %1441
    %v1443 = vlaneseq
    %v1444 = vshrl.u32 %v1443, 7
    %v1445 = vadd.s32 %v1444, 48
    %1446 = vset.pattern.permute.xlu0 %v1445
    %1447 = vperm.xlu0 %1446, %v1406
    %v1448 = vpop.permute.xlu0 %1447
    %v1449 = vlaneseq
    %v1450 = vshrl.u32 %v1449, 7
    %v1451 = vadd.s32 %v1450, 56
    %1452 = vset.pattern.permute.xlu0 %v1451
    %1453 = vperm.xlu0 %1452, %v1406
    %v1454 = vpop.permute.xlu0 %1453
    %v1455 = vperm.slane %v1160, 6
    %v1456 = vlaneseq
    %v1457 = vshrl.u32 %v1456, 7
    %1459 = vset.pattern.permute.xlu0 %v1457
    %1460 = vperm.xlu0 %1459, %v1455
    %v1461 = vpop.permute.xlu0 %1460
    %v1462 = vlaneseq
    %v1463 = vshrl.u32 %v1462, 7
    %v1464 = vadd.s32 %v1463, 8
    %1465 = vset.pattern.permute.xlu0 %v1464
    %1466 = vperm.xlu0 %1465, %v1455
    %v1467 = vpop.permute.xlu0 %1466
    %v1468 = vlaneseq
    %v1469 = vshrl.u32 %v1468, 7
    %v1470 = vadd.s32 %v1469, 16
    %1471 = vset.pattern.permute.xlu0 %v1470
    %1472 = vperm.xlu0 %1471, %v1455
    %v1473 = vpop.permute.xlu0 %1472
    %v1474 = vlaneseq
    %v1475 = vshrl.u32 %v1474, 7
    %v1476 = vadd.s32 %v1475, 24
    %1477 = vset.pattern.permute.xlu0 %v1476
    %1478 = vperm.xlu0 %1477, %v1455
    %v1479 = vpop.permute.xlu0 %1478
    %v1480 = vlaneseq
    %v1481 = vshrl.u32 %v1480, 7
    %v1482 = vadd.s32 %v1481, 32
    %1483 = vset.pattern.permute.xlu0 %v1482
    %1484 = vperm.xlu0 %1483, %v1455
    %v1485 = vpop.permute.xlu0 %1484
    %v1486 = vlaneseq
    %v1487 = vshrl.u32 %v1486, 7
    %v1488 = vadd.s32 %v1487, 40
    %1489 = vset.pattern.permute.xlu0 %v1488
    %1490 = vperm.xlu0 %1489, %v1455
    %v1491 = vpop.permute.xlu0 %1490
    %v1492 = vlaneseq
    %v1493 = vshrl.u32 %v1492, 7
    %v1494 = vadd.s32 %v1493, 48
    %1495 = vset.pattern.permute.xlu0 %v1494
    %1496 = vperm.xlu0 %1495, %v1455
    %v1497 = vpop.permute.xlu0 %1496
    %v1498 = vlaneseq
    %v1499 = vshrl.u32 %v1498, 7
    %v1500 = vadd.s32 %v1499, 56
    %1501 = vset.pattern.permute.xlu0 %v1500
    %1502 = vperm.xlu0 %1501, %v1455
    %v1503 = vpop.permute.xlu0 %1502
    %v1504 = vperm.slane %v1160, 7
    %v1505 = vlaneseq
    %v1506 = vshrl.u32 %v1505, 7
    %1508 = vset.pattern.permute.xlu0 %v1506
    %1509 = vperm.xlu0 %1508, %v1504
    %v1510 = vpop.permute.xlu0 %1509
    %v1511 = vlaneseq
    %v1512 = vshrl.u32 %v1511, 7
    %v1513 = vadd.s32 %v1512, 8
    %1514 = vset.pattern.permute.xlu0 %v1513
    %1515 = vperm.xlu0 %1514, %v1504
    %v1516 = vpop.permute.xlu0 %1515
    %v1517 = vlaneseq
    %v1518 = vshrl.u32 %v1517, 7
    %v1519 = vadd.s32 %v1518, 16
    %1520 = vset.pattern.permute.xlu0 %v1519
    %1521 = vperm.xlu0 %1520, %v1504
    %v1522 = vpop.permute.xlu0 %1521
    %v1523 = vlaneseq
    %v1524 = vshrl.u32 %v1523, 7
    %v1525 = vadd.s32 %v1524, 24
    %1526 = vset.pattern.permute.xlu0 %v1525
    %1527 = vperm.xlu0 %1526, %v1504
    %v1528 = vpop.permute.xlu0 %1527
    %v1529 = vlaneseq
    %v1530 = vshrl.u32 %v1529, 7
    %v1531 = vadd.s32 %v1530, 32
    %1532 = vset.pattern.permute.xlu0 %v1531
    %1533 = vperm.xlu0 %1532, %v1504
    %v1534 = vpop.permute.xlu0 %1533
    %v1535 = vlaneseq
    %v1536 = vshrl.u32 %v1535, 7
    %v1537 = vadd.s32 %v1536, 40
    %1538 = vset.pattern.permute.xlu0 %v1537
    %1539 = vperm.xlu0 %1538, %v1504
    %v1540 = vpop.permute.xlu0 %1539
    %v1541 = vlaneseq
    %v1542 = vshrl.u32 %v1541, 7
    %v1543 = vadd.s32 %v1542, 48
    %1544 = vset.pattern.permute.xlu0 %v1543
    %1545 = vperm.xlu0 %1544, %v1504
    %v1546 = vpop.permute.xlu0 %1545
    %v1547 = vlaneseq
    %v1548 = vshrl.u32 %v1547, 7
    %v1549 = vadd.s32 %v1548, 56
    %1550 = vset.pattern.permute.xlu0 %v1549
    %1551 = vperm.xlu0 %1550, %v1504
    %v1552 = vpop.permute.xlu0 %1551
    %v1553 = vmul.f32 %v1167, %v31
    %v1554 = vmul.f32 %v1167, %v32
    %v1555 = vmul.f32 %v1173, %v33
    %v1556 = vmul.f32 %v1173, %v34
    %v1557 = vmul.f32 %v1179, %v35
    %v1558 = vmul.f32 %v1179, %v36
    %v1559 = vmul.f32 %v1185, %v37
    %v1560 = vmul.f32 %v1185, %v38
    %v1561 = vmul.f32 %v1191, %v39
    %v1562 = vmul.f32 %v1191, %v40
    %v1563 = vmul.f32 %v1197, %v41
    %v1564 = vmul.f32 %v1197, %v42
    %v1565 = vmul.f32 %v1203, %v43
    %v1566 = vmul.f32 %v1203, %v44
    %v1567 = vmul.f32 %v1209, %v45
    %v1568 = vmul.f32 %v1209, %v46
    %v1569 = vmul.f32 %v1216, %v47
    %v1570 = vmul.f32 %v1216, %v48
    %v1571 = vmul.f32 %v1222, %v49
    %v1572 = vmul.f32 %v1222, %v50
    %v1573 = vmul.f32 %v1228, %v51
    %v1574 = vmul.f32 %v1228, %v52
    %v1575 = vmul.f32 %v1234, %v53
    %v1576 = vmul.f32 %v1234, %v54
    %v1577 = vmul.f32 %v1240, %v55
    %v1578 = vmul.f32 %v1240, %v56
    %v1579 = vmul.f32 %v1246, %v57
    %v1580 = vmul.f32 %v1246, %v58
    %v1581 = vmul.f32 %v1252, %v59
    %v1582 = vmul.f32 %v1252, %v60
    %v1583 = vmul.f32 %v1258, %v61
    %v1584 = vmul.f32 %v1258, %v62
    %v1585 = vmul.f32 %v1265, %v63
    %v1586 = vmul.f32 %v1265, %v64
    %v1587 = vmul.f32 %v1271, %v65
    %v1588 = vmul.f32 %v1271, %v66
    %v1589 = vmul.f32 %v1277, %v67
    %v1590 = vmul.f32 %v1277, %v68
    %v1591 = vmul.f32 %v1283, %v69
    %v1592 = vmul.f32 %v1283, %v70
    %v1593 = vmul.f32 %v1289, %v71
    %v1594 = vmul.f32 %v1289, %v72
    %v1595 = vmul.f32 %v1295, %v73
    %v1596 = vmul.f32 %v1295, %v74
    %v1597 = vmul.f32 %v1301, %v75
    %v1598 = vmul.f32 %v1301, %v76
    %v1599 = vmul.f32 %v1307, %v77
    %v1600 = vmul.f32 %v1307, %v78
    %v1601 = vmul.f32 %v1314, %v79
    %v1602 = vmul.f32 %v1314, %v80
    %v1603 = vmul.f32 %v1320, %v81
    %v1604 = vmul.f32 %v1320, %v82
    %v1605 = vmul.f32 %v1326, %v83
    %v1606 = vmul.f32 %v1326, %v84
    %v1607 = vmul.f32 %v1332, %v85
    %v1608 = vmul.f32 %v1332, %v86
    %v1609 = vmul.f32 %v1338, %v87
    %v1610 = vmul.f32 %v1338, %v88
    %v1611 = vmul.f32 %v1344, %v89
    %v1612 = vmul.f32 %v1344, %v90
    %v1613 = vmul.f32 %v1350, %v91
    %v1614 = vmul.f32 %v1350, %v92
    %v1615 = vmul.f32 %v1356, %v93
    %v1616 = vmul.f32 %v1356, %v94
    %v1617 = vmul.f32 %v1363, %v95
    %v1618 = vmul.f32 %v1363, %v96
    %v1619 = vmul.f32 %v1369, %v97
    %v1620 = vmul.f32 %v1369, %v98
    %v1621 = vmul.f32 %v1375, %v99
    %v1622 = vmul.f32 %v1375, %v100
    %v1623 = vmul.f32 %v1381, %v101
    %v1624 = vmul.f32 %v1381, %v102
    %v1625 = vmul.f32 %v1387, %v103
    %v1626 = vmul.f32 %v1387, %v104
    %v1627 = vmul.f32 %v1393, %v105
    %v1628 = vmul.f32 %v1393, %v106
    %v1629 = vmul.f32 %v1399, %v107
    %v1630 = vmul.f32 %v1399, %v108
    %v1631 = vmul.f32 %v1405, %v109
    %v1632 = vmul.f32 %v1405, %v110
    %v1633 = vmul.f32 %v1412, %v111
    %v1634 = vmul.f32 %v1412, %v112
    %v1635 = vmul.f32 %v1418, %v113
    %v1636 = vmul.f32 %v1418, %v114
    %v1637 = vmul.f32 %v1424, %v115
    %v1638 = vmul.f32 %v1424, %v116
    %v1639 = vmul.f32 %v1430, %v117
    %v1640 = vmul.f32 %v1430, %v118
    %v1641 = vmul.f32 %v1436, %v119
    %v1642 = vmul.f32 %v1436, %v120
    %v1643 = vmul.f32 %v1442, %v121
    %v1644 = vmul.f32 %v1442, %v122
    %v1645 = vmul.f32 %v1448, %v123
    %v1646 = vmul.f32 %v1448, %v124
    %v1647 = vmul.f32 %v1454, %v125
    %v1648 = vmul.f32 %v1454, %v126
    %v1649 = vmul.f32 %v1461, %v127
    %v1650 = vmul.f32 %v1461, %v128
    %v1651 = vmul.f32 %v1467, %v129
    %v1652 = vmul.f32 %v1467, %v130
    %v1653 = vmul.f32 %v1473, %v131
    %v1654 = vmul.f32 %v1473, %v132
    %v1655 = vmul.f32 %v1479, %v133
    %v1656 = vmul.f32 %v1479, %v134
    %v1657 = vmul.f32 %v1485, %v135
    %v1658 = vmul.f32 %v1485, %v136
    %v1659 = vmul.f32 %v1491, %v137
    %v1660 = vmul.f32 %v1491, %v138
    %v1661 = vmul.f32 %v1497, %v139
    %v1662 = vmul.f32 %v1497, %v140
    %v1663 = vmul.f32 %v1503, %v141
    %v1664 = vmul.f32 %v1503, %v142
    %v1665 = vmul.f32 %v1510, %v143
    %v1666 = vmul.f32 %v1510, %v144
    %v1667 = vmul.f32 %v1516, %v145
    %v1668 = vmul.f32 %v1516, %v146
    %v1669 = vmul.f32 %v1522, %v147
    %v1670 = vmul.f32 %v1522, %v148
    %v1671 = vmul.f32 %v1528, %v149
    %v1672 = vmul.f32 %v1528, %v150
    %v1673 = vmul.f32 %v1534, %v151
    %v1674 = vmul.f32 %v1534, %v152
    %v1675 = vmul.f32 %v1540, %v153
    %v1676 = vmul.f32 %v1540, %v154
    %v1677 = vmul.f32 %v1546, %v155
    %v1678 = vmul.f32 %v1546, %v156
    %v1679 = vmul.f32 %v1552, %v157
    %v1680 = vmul.f32 %v1552, %v158
    %1681 = vst [vmem:[#allocation5] sm:$0xff] %v1553
    %1682 = vst [vmem:[#allocation5 + $0x8] sm:$0xff] %v1554
    %1683 = vst [vmem:[#allocation5 + $0x10] sm:$0xff] %v1555
    %1684 = vst [vmem:[#allocation5 + $0x18] sm:$0xff] %v1556
    %1685 = vst [vmem:[#allocation5 + $0x20] sm:$0xff] %v1557
    %1686 = vst [vmem:[#allocation5 + $0x28] sm:$0xff] %v1558
    %1687 = vst [vmem:[#allocation5 + $0x30] sm:$0xff] %v1559
    %1688 = vst [vmem:[#allocation5 + $0x38] sm:$0xff] %v1560
    %1689 = vst [vmem:[#allocation5 + $0x40] sm:$0xff] %v1561
    %1690 = vst [vmem:[#allocation5 + $0x48] sm:$0xff] %v1562
    %1691 = vst [vmem:[#allocation5 + $0x50] sm:$0xff] %v1563
    %1692 = vst [vmem:[#allocation5 + $0x58] sm:$0xff] %v1564
    %1693 = vst [vmem:[#allocation5 + $0x60] sm:$0xff] %v1565
    %1694 = vst [vmem:[#allocation5 + $0x68] sm:$0xff] %v1566
    %1695 = vst [vmem:[#allocation5 + $0x70] sm:$0xff] %v1567
    %1696 = vst [vmem:[#allocation5 + $0x78] sm:$0xff] %v1568
    %1697 = vst [vmem:[#allocation5 + $0x80] sm:$0xff] %v1569
    %1698 = vst [vmem:[#allocation5 + $0x88] sm:$0xff] %v1570
    %1699 = vst [vmem:[#allocation5 + $0x90] sm:$0xff] %v1571
    %1700 = vst [vmem:[#allocation5 + $0x98] sm:$0xff] %v1572
    %1701 = vst [vmem:[#allocation5 + $0xa0] sm:$0xff] %v1573
    %1702 = vst [vmem:[#allocation5 + $0xa8] sm:$0xff] %v1574
    %1703 = vst [vmem:[#allocation5 + $0xb0] sm:$0xff] %v1575
    %1704 = vst [vmem:[#allocation5 + $0xb8] sm:$0xff] %v1576
    %1705 = vst [vmem:[#allocation5 + $0xc0] sm:$0xff] %v1577
    %1706 = vst [vmem:[#allocation5 + $0xc8] sm:$0xff] %v1578
    %1707 = vst [vmem:[#allocation5 + $0xd0] sm:$0xff] %v1579
    %1708 = vst [vmem:[#allocation5 + $0xd8] sm:$0xff] %v1580
    %1709 = vst [vmem:[#allocation5 + $0xe0] sm:$0xff] %v1581
    %1710 = vst [vmem:[#allocation5 + $0xe8] sm:$0xff] %v1582
    %1711 = vst [vmem:[#allocation5 + $0xf0] sm:$0xff] %v1583
    %1712 = vst [vmem:[#allocation5 + $0xf8] sm:$0xff] %v1584
    %1713 = vst [vmem:[#allocation5 + $0x100] sm:$0xff] %v1585
    %1714 = vst [vmem:[#allocation5 + $0x108] sm:$0xff] %v1586
    %1715 = vst [vmem:[#allocation5 + $0x110] sm:$0xff] %v1587
    %1716 = vst [vmem:[#allocation5 + $0x118] sm:$0xff] %v1588
    %1717 = vst [vmem:[#allocation5 + $0x120] sm:$0xff] %v1589
    %1718 = vst [vmem:[#allocation5 + $0x128] sm:$0xff] %v1590
    %1719 = vst [vmem:[#allocation5 + $0x130] sm:$0xff] %v1591
    %1720 = vst [vmem:[#allocation5 + $0x138] sm:$0xff] %v1592
    %1721 = vst [vmem:[#allocation5 + $0x140] sm:$0xff] %v1593
    %1722 = vst [vmem:[#allocation5 + $0x148] sm:$0xff] %v1594
    %1723 = vst [vmem:[#allocation5 + $0x150] sm:$0xff] %v1595
    %1724 = vst [vmem:[#allocation5 + $0x158] sm:$0xff] %v1596
    %1725 = vst [vmem:[#allocation5 + $0x160] sm:$0xff] %v1597
    %1726 = vst [vmem:[#allocation5 + $0x168] sm:$0xff] %v1598
    %1727 = vst [vmem:[#allocation5 + $0x170] sm:$0xff] %v1599
    %1728 = vst [vmem:[#allocation5 + $0x178] sm:$0xff] %v1600
    %1729 = vst [vmem:[#allocation5 + $0x180] sm:$0xff] %v1601
    %1730 = vst [vmem:[#allocation5 + $0x188] sm:$0xff] %v1602
    %1731 = vst [vmem:[#allocation5 + $0x190] sm:$0xff] %v1603
    %1732 = vst [vmem:[#allocation5 + $0x198] sm:$0xff] %v1604
    %1733 = vst [vmem:[#allocation5 + $0x1a0] sm:$0xff] %v1605
    %1734 = vst [vmem:[#allocation5 + $0x1a8] sm:$0xff] %v1606
    %1735 = vst [vmem:[#allocation5 + $0x1b0] sm:$0xff] %v1607
    %1736 = vst [vmem:[#allocation5 + $0x1b8] sm:$0xff] %v1608
    %1737 = vst [vmem:[#allocation5 + $0x1c0] sm:$0xff] %v1609
    %1738 = vst [vmem:[#allocation5 + $0x1c8] sm:$0xff] %v1610
    %1739 = vst [vmem:[#allocation5 + $0x1d0] sm:$0xff] %v1611
    %1740 = vst [vmem:[#allocation5 + $0x1d8] sm:$0xff] %v1612
    %1741 = vst [vmem:[#allocation5 + $0x1e0] sm:$0xff] %v1613
    %1742 = vst [vmem:[#allocation5 + $0x1e8] sm:$0xff] %v1614
    %1743 = vst [vmem:[#allocation5 + $0x1f0] sm:$0xff] %v1615
    %1744 = vst [vmem:[#allocation5 + $0x1f8] sm:$0xff] %v1616
    %1745 = vst [vmem:[#allocation5 + $0x200] sm:$0xff] %v1617
    %1746 = vst [vmem:[#allocation5 + $0x208] sm:$0xff] %v1618
    %1747 = vst [vmem:[#allocation5 + $0x210] sm:$0xff] %v1619
    %1748 = vst [vmem:[#allocation5 + $0x218] sm:$0xff] %v1620
    %1749 = vst [vmem:[#allocation5 + $0x220] sm:$0xff] %v1621
    %1750 = vst [vmem:[#allocation5 + $0x228] sm:$0xff] %v1622
    %1751 = vst [vmem:[#allocation5 + $0x230] sm:$0xff] %v1623
    %1752 = vst [vmem:[#allocation5 + $0x238] sm:$0xff] %v1624
    %1753 = vst [vmem:[#allocation5 + $0x240] sm:$0xff] %v1625
    %1754 = vst [vmem:[#allocation5 + $0x248] sm:$0xff] %v1626
    %1755 = vst [vmem:[#allocation5 + $0x250] sm:$0xff] %v1627
    %1756 = vst [vmem:[#allocation5 + $0x258] sm:$0xff] %v1628
    %1757 = vst [vmem:[#allocation5 + $0x260] sm:$0xff] %v1629
    %1758 = vst [vmem:[#allocation5 + $0x268] sm:$0xff] %v1630
    %1759 = vst [vmem:[#allocation5 + $0x270] sm:$0xff] %v1631
    %1760 = vst [vmem:[#allocation5 + $0x278] sm:$0xff] %v1632
    %1761 = vst [vmem:[#allocation5 + $0x280] sm:$0xff] %v1633
    %1762 = vst [vmem:[#allocation5 + $0x288] sm:$0xff] %v1634
    %1763 = vst [vmem:[#allocation5 + $0x290] sm:$0xff] %v1635
    %1764 = vst [vmem:[#allocation5 + $0x298] sm:$0xff] %v1636
    %1765 = vst [vmem:[#allocation5 + $0x2a0] sm:$0xff] %v1637
    %1766 = vst [vmem:[#allocation5 + $0x2a8] sm:$0xff] %v1638
    %1767 = vst [vmem:[#allocation5 + $0x2b0] sm:$0xff] %v1639
    %1768 = vst [vmem:[#allocation5 + $0x2b8] sm:$0xff] %v1640
    %1769 = vst [vmem:[#allocation5 + $0x2c0] sm:$0xff] %v1641
    %1770 = vst [vmem:[#allocation5 + $0x2c8] sm:$0xff] %v1642
    %1771 = vst [vmem:[#allocation5 + $0x2d0] sm:$0xff] %v1643
    %1772 = vst [vmem:[#allocation5 + $0x2d8] sm:$0xff] %v1644
    %1773 = vst [vmem:[#allocation5 + $0x2e0] sm:$0xff] %v1645
    %1774 = vst [vmem:[#allocation5 + $0x2e8] sm:$0xff] %v1646
    %1775 = vst [vmem:[#allocation5 + $0x2f0] sm:$0xff] %v1647
    %1776 = vst [vmem:[#allocation5 + $0x2f8] sm:$0xff] %v1648
    %1777 = vst [vmem:[#allocation5 + $0x300] sm:$0xff] %v1649
    %1778 = vst [vmem:[#allocation5 + $0x308] sm:$0xff] %v1650
    %1779 = vst [vmem:[#allocation5 + $0x310] sm:$0xff] %v1651
    %1780 = vst [vmem:[#allocation5 + $0x318] sm:$0xff] %v1652
    %1781 = vst [vmem:[#allocation5 + $0x320] sm:$0xff] %v1653
    %1782 = vst [vmem:[#allocation5 + $0x328] sm:$0xff] %v1654
    %1783 = vst [vmem:[#allocation5 + $0x330] sm:$0xff] %v1655
    %1784 = vst [vmem:[#allocation5 + $0x338] sm:$0xff] %v1656
    %1785 = vst [vmem:[#allocation5 + $0x340] sm:$0xff] %v1657
    %1786 = vst [vmem:[#allocation5 + $0x348] sm:$0xff] %v1658
    %1787 = vst [vmem:[#allocation5 + $0x350] sm:$0xff] %v1659
    %1788 = vst [vmem:[#allocation5 + $0x358] sm:$0xff] %v1660
    %1789 = vst [vmem:[#allocation5 + $0x360] sm:$0xff] %v1661
    %1790 = vst [vmem:[#allocation5 + $0x368] sm:$0xff] %v1662
    %1791 = vst [vmem:[#allocation5 + $0x370] sm:$0xff] %v1663
    %1792 = vst [vmem:[#allocation5 + $0x378] sm:$0xff] %v1664
    %1793 = vst [vmem:[#allocation5 + $0x380] sm:$0xff] %v1665
    %1794 = vst [vmem:[#allocation5 + $0x388] sm:$0xff] %v1666
    %1795 = vst [vmem:[#allocation5 + $0x390] sm:$0xff] %v1667
    %1796 = vst [vmem:[#allocation5 + $0x398] sm:$0xff] %v1668
    %1797 = vst [vmem:[#allocation5 + $0x3a0] sm:$0xff] %v1669
    %1798 = vst [vmem:[#allocation5 + $0x3a8] sm:$0xff] %v1670
    %1799 = vst [vmem:[#allocation5 + $0x3b0] sm:$0xff] %v1671
    %1800 = vst [vmem:[#allocation5 + $0x3b8] sm:$0xff] %v1672
    %1801 = vst [vmem:[#allocation5 + $0x3c0] sm:$0xff] %v1673
    %1802 = vst [vmem:[#allocation5 + $0x3c8] sm:$0xff] %v1674
    %1803 = vst [vmem:[#allocation5 + $0x3d0] sm:$0xff] %v1675
    %1804 = vst [vmem:[#allocation5 + $0x3d8] sm:$0xff] %v1676
    %1805 = vst [vmem:[#allocation5 + $0x3e0] sm:$0xff] %v1677
    %1806 = vst [vmem:[#allocation5 + $0x3e8] sm:$0xff] %v1678
    %1807 = vst [vmem:[#allocation5 + $0x3f0] sm:$0xff] %v1679
    %1808 = vst [vmem:[#allocation5 + $0x3f8] sm:$0xff] %v1680
    // Predicated region
    $region18: #{tpu_custom_call.1} parent=1 // pred_check
      _
    $region19: #{tpu_custom_call.1} parent=1 // pred_check_branch
      %1810 = sbr.rel (0) target = $region21
    $region20: #{tpu_custom_call.1} parent=1 // pred_region
      %1812 = vsyncadd [#allocation4], 0
      %s1813 = sshll.u32 [#allocation5], 4
      %s1814 = int_to_ptr.vmem [resolvable:$true] %s1813
      %s1815 = sshll.u32 %s3, 4
      %s1816 = int_to_ptr.hbm [resolvable:$true] %s1815
      %1821 = dma.vmem_to_hbm [thread:$0]  %s1814, 16384, %s1816, [#allocation4], 256, 256, 16
    $region21: #{tpu_custom_call.1} parent=1 // pred_fallthru
      _
    // Predicated region
    $region22: #{tpu_custom_call.1} parent=1 // pred_check
      _
    $region23: #{tpu_custom_call.1} parent=1 // pred_check_branch
      %1823 = sbr.rel (0) target = $region25
    $region24: #{tpu_custom_call.1} parent=1 // pred_region
      %1825 = dma.done [#allocation4], 16384
    $region25: #{tpu_custom_call.1} parent=1 // pred_fallthru
      _
    %1826 = vsyncpa [#allocation3], 1
    %1827 = vsyncpa [#allocation4], 1

</llo_original>
